<compile_context>
chip_gen: v7x
topology: tpu7x:2x2x1
jax: 0.10.0
libtpu: 0.0.40
codegen_flags: <defaults>
</compile_context>

<pallas_src>
import functools

import jax
import jax.numpy as jnp
from jax.experimental import pallas as pl
from jax.experimental.pallas import tpu as pltpu

# Representative primitive set (NA_PRIMITIVES not available in the snippet).
NA_PRIMITIVES = ("comp_sub", "comp_mult", "comp_cat")

COMPUTE_DTYPE = jnp.bfloat16   # activations / weights; accumulation stays f32


def _round_up(v, m):
    return (v + m - 1) // m * m


def _cdiv(a, b):
    return -(-a // b)


# ---------------------------------------------------------------------------
# VMEM planning (generation-aware: v5e/v6e 128 MiB, v7x 64 MiB)
# ---------------------------------------------------------------------------
@functools.lru_cache(maxsize=None)
def _vmem_plan():
    try:
        cap = int(pltpu.get_tpu_info().vmem_capacity_bytes)
    except Exception:
        cap = 64 * 1024 * 1024          # conservative default: v7x per-TC VMEM
    limit = cap * 3 // 4                # scoped-VMEM limit requested from Mosaic
    budget = cap // 2                   # what the tile chooser plans against
    return budget, limit


def _choose_tile_h(h_pad, max_tile_h=512):
    """Column tile (multiple of 128 dividing h_pad); full width when small."""
    if h_pad <= max_tile_h:
        return h_pad
    for t in range(max_tile_h, 127, -128):
        if h_pad % t == 0:
            return t
    return 128


def _choose_tile_n(n, k_nbr, d_in, tile_h, budget_bytes, max_tile=1024):
    """Largest multiple-of-16 row tile that keeps double-buffered activation
    tiles + resident weights inside the generation-aware VMEM budget, while
    keeping >=2 row blocks so both v7x TensorCores get work."""
    in_b, out_b = 2, 4                                    # bf16 in, f32 out
    per_row = 2 * ((k_nbr + d_in) * in_b + tile_h * out_b)      # double-buffered
    resident = 2 * ((k_nbr + d_in) * tile_h * in_b + tile_h * 4)  # weights+bias UB
    avail = max(budget_bytes - resident, 16 * per_row)
    fit = avail // per_row
    n16 = _round_up(n, 16)
    tile = min(max_tile, fit, n16)
    if n16 >= 32:                       # keep the row grid >= 2 steps
        tile = min(tile, _round_up(_cdiv(n16, 2), 16))
    return max(16, (tile // 16) * 16)


# ---------------------------------------------------------------------------
# Pallas kernel: fused (neighbor GEMM + self GEMM + bias + ReLU) on one tile
# ---------------------------------------------------------------------------
def _gconv_kernel(agg_ref, x_ref, wn_ref, ws_ref, b_ref, o_ref):
    # bf16 operands, f32 MXU accumulation; bias added exactly once, ReLU in f32.
    y = jnp.dot(agg_ref[...], wn_ref[...], preferred_element_type=jnp.float32)
    y = y + jnp.dot(x_ref[...], ws_ref[...], preferred_element_type=jnp.float32)
    y = y + b_ref[...]
    o_ref[...] = jnp.maximum(y, 0.0).astype(o_ref.dtype)


def _gconv_linear(agg, x, w_nbr, w_self, b, tile_n, tile_h, vmem_limit):
    """out = ReLU(agg @ W_nbr + x @ W_self + b), row/col tiled with Pallas."""
    n_pad, k_nbr = agg.shape
    d_in = x.shape[1]
    h_pad = w_nbr.shape[1]
    grid = (n_pad // tile_n, h_pad // tile_h)
    single_col = grid[1] == 1

    flops = 2 * n_pad * (k_nbr + d_in) * h_pad
    bytes_accessed = ((agg.size + x.size) * 2
                      + (w_nbr.size + w_self.size) * 2 + b.size * 4
                      + n_pad * h_pad * 4)

    def build(single_buffer_weights):
        def wspec(shape, imap):
            if single_buffer_weights:
                # Grid-invariant weights: one VMEM buffer is enough — halves
                # their resident footprint (matters under v7x's 64 MiB VMEM).
                return pl.BlockSpec(shape, imap, pipeline_mode=pl.Buffered(1))
            return pl.BlockSpec(shape, imap)

        return pl.pallas_call(
            _gconv_kernel,
            out_shape=jax.ShapeDtypeStruct((n_pad, h_pad), jnp.float32),
            grid_spec=pltpu.PrefetchScalarGridSpec(
                num_scalar_prefetch=0,
                grid=grid,
                in_specs=[
                    # Row-tiled bf16 activations (pipelined by Pallas).
                    pl.BlockSpec((tile_n, k_nbr), lambda i, j: (i, 0)),
                    pl.BlockSpec((tile_n, d_in), lambda i, j: (i, 0)),
                    # Resident (column-tiled for large d_out) weights / bias.
                    wspec((k_nbr, tile_h), lambda i, j: (0, j)),
                    wspec((d_in, tile_h), lambda i, j: (0, j)),
                    wspec((1, tile_h), lambda i, j: (0, j)),
                ],
                out_specs=pl.BlockSpec((tile_n, tile_h), lambda i, j: (i, j)),
            ),
            compiler_params=pltpu.CompilerParams(
                # Both axes independent -> megacore-shard on v7x; harmless on
                # single-TC v5e/v6e.
                dimension_semantics=("parallel", "parallel"),
                vmem_limit_bytes=vmem_limit,
            ),
            cost_estimate=pl.CostEstimate(
                flops=flops, transcendentals=0, bytes_accessed=bytes_accessed),
        )(agg, x, w_nbr, w_self, b)

    if single_col:
        try:
            return build(True)
        except Exception:
            # pipeline_mode=pl.Buffered(1) unsupported on this jax/libtpu
            # combo: fall back to default double-buffered weights.
            pass
    return build(False)


# ---------------------------------------------------------------------------
# Message aggregation (irregular gather / scatter-add) — left to XLA.
# ---------------------------------------------------------------------------
def _aggregate(x_b, edge_index, edge_type, rel_b, primitive, num_segments):
    # TODO(synk): data-dependent per-edge gather + scatter-add stays in XLA; a
    # sorted-edge scalar-prefetch Pallas schedule could fuse it with the GEMM.
    src, dst = edge_index[0], edge_index[1]
    h_src = x_b[src]                 # [E, D] bf16
    rel = rel_b[edge_type]           # [E, D] bf16
    if primitive == "comp_sub":
        return jax.ops.segment_sum(h_src - rel, dst, num_segments=num_segments)
    if primitive == "comp_mult":
        return jax.ops.segment_sum(h_src * rel, dst, num_segments=num_segments)
    # comp_cat: concat of the two segment sums == segment sum of the per-edge
    # concat (linearity); avoids materializing an [E, 2D] message array.
    return jnp.concatenate(
        [jax.ops.segment_sum(h_src, dst, num_segments=num_segments),
         jax.ops.segment_sum(rel, dst, num_segments=num_segments)], axis=-1)


# ---------------------------------------------------------------------------
# GOpBlock
# ---------------------------------------------------------------------------
class GOpBlock:
    """JAX/Pallas port of the PyTorch GOpBlock.

    Holds one candidate op's parameters per primitive and dispatches on the
    `primitive` string, like the torch forward:
        self._ops[NA_PRIMITIVES.index(primitive)](x, edge_index, edge_type, rel_embeds)
    """

    def __init__(self, input_dim, output_dim, rel_num, base_num, dropout,
                 head_num, key):
        # TODO(synk): dropout / base_num (basis decomposition) / head_num (GAT
        # heads) accepted for signature fidelity; G_OPS internals unavailable,
        # inference path implemented (no dropout).
        self.input_dim = input_dim
        self.output_dim = output_dim
        self.rel_num = rel_num
        self.h_pad = _round_up(output_dim, 128)   # lane-dense output width
        self.params = {}
        for i, prim in enumerate(NA_PRIMITIVES):
            k_nbr = 2 * input_dim if prim == "comp_cat" else input_dim
            k1, k2, k3 = jax.random.split(jax.random.fold_in(key, i), 3)
            bound = 1.0 / (k_nbr ** 0.5)   # torch.nn.Linear default init range
            w_nbr = jax.random.uniform(k1, (k_nbr, output_dim), jnp.float32,
                                       minval=-bound, maxval=bound)
            w_self = jax.random.uniform(k2, (input_dim, output_dim), jnp.float32,
                                        minval=-bound, maxval=bound)
            b = jax.random.uniform(k3, (1, output_dim), jnp.float32,
                                   minval=-bound, maxval=bound)
            pad = ((0, 0), (0, self.h_pad - output_dim))
            # Lane-pad ONCE at init (weights are static) and store bf16
            # weights; bias kept f32 (added after f32 accumulation).
            self.params[prim] = (
                jnp.pad(w_nbr, pad).astype(COMPUTE_DTYPE),
                jnp.pad(w_self, pad).astype(COMPUTE_DTYPE),
                jnp.pad(b, pad),
            )

    def __call__(self, x, edge_index, edge_type, rel_embeds, primitive):
        assert primitive in NA_PRIMITIVES
        assert x.shape[1] == self.input_dim
        n = x.shape[0]
        w_nbr, w_self, b = self.params[primitive]
        k_nbr = w_nbr.shape[0]

        # bf16 activations: halves HBM traffic of the (memory-bound) gather,
        # scatter-add and GEMM; the kernel accumulates in f32.
        x_b = x.astype(COMPUTE_DTYPE)
        rel_b = rel_embeds.astype(COMPUTE_DTYPE)

        budget, vmem_limit = _vmem_plan()
        tile_h = _choose_tile_h(self.h_pad)
        tile_n = _choose_tile_n(n, k_nbr, self.input_dim, tile_h, budget)
        n_pad = _round_up(n, tile_n)

        # Row padding of `agg` is free: segment_sum writes n_pad segments.
        agg = _aggregate(x_b, edge_index, edge_type, rel_b, primitive, n_pad)
        if n_pad != n:
            # TODO(synk): only the narrow bf16 self-feature matrix still needs
            # a pad copy; a ragged last row tile would remove it entirely.
            x_b = jnp.pad(x_b, ((0, n_pad - n), (0, 0)))

        out = _gconv_linear(agg, x_b, w_nbr, w_self, b, tile_n, tile_h,
                            vmem_limit)
        # NOTE: pick output_dim % 128 == 0 (and consume the padded buffer) in
        # production configs to avoid writing + re-copying padded lanes; the
        # slice here keeps the module's exact [n, output_dim] contract.
        return out[:n, :self.output_dim]


# ---------------------------------------------------------------------------
# Pure-JAX reference (matched mixed precision) for correctness checking.
# ---------------------------------------------------------------------------
def _reference(block, x, edge_index, edge_type, rel_embeds, primitive):
    # Same bf16 activation/weight precision as the Pallas path (so the dense
    # kernel is verified tightly); vs. a pure-f32 path expect ~1e-2 deviation.
    w_nbr, w_self, b = block.params[primitive]
    n = x.shape[0]
    src, dst = edge_index[0], edge_index[1]
    x_b = x.astype(COMPUTE_DTYPE)
    h_src = x_b[src]
    rel = rel_embeds.astype(COMPUTE_DTYPE)[edge_type]
    if primitive == "comp_sub":
        agg = jax.ops.segment_sum(h_src - rel, dst, num_segments=n)
    elif primitive == "comp_mult":
        agg = jax.ops.segment_sum(h_src * rel, dst, num_segments=n)
    else:  # comp_cat
        agg = jnp.concatenate(
            [jax.ops.segment_sum(h_src, dst, num_segments=n),
             jax.ops.segment_sum(rel, dst, num_segments=n)], axis=-1)
    y = (agg.astype(jnp.float32) @ w_nbr.astype(jnp.float32)
         + x_b.astype(jnp.float32) @ w_self.astype(jnp.float32)
         + b)
    return jnp.maximum(y, 0.0)[:, :block.output_dim]


if __name__ == "__main__":
    # Small-but-not-toy shapes: exercises the row grid (>=2 blocks), the
    # row-padding path (500 -> 512) and the lane-padding path (64 -> 128).
    N, E = 500, 2000
    IN_DIM, OUT_DIM = 64, 64
    REL_NUM, BASE_NUM, HEAD_NUM, DROPOUT = 8, 2, 2, 0.1

    key = jax.random.PRNGKey(0)
    kp, kx, kr, ks, kd, kt = jax.random.split(key, 6)

    block = GOpBlock(IN_DIM, OUT_DIM, REL_NUM, BASE_NUM, DROPOUT, HEAD_NUM,
                     key=kp)

    x = jax.random.normal(kx, (N, IN_DIM), jnp.float32)
    rel_embeds = jax.random.normal(kr, (REL_NUM, IN_DIM), jnp.float32)
    src = jax.random.randint(ks, (E,), 0, N)
    dst = jax.random.randint(kd, (E,), 0, N)
    edge_index = jnp.stack([src, dst])                  # [2, E]
    edge_type = jax.random.randint(kt, (E,), 0, REL_NUM)

    ok = True
    for prim in NA_PRIMITIVES:
        out = jax.block_until_ready(
            block(x, edge_index, edge_type, rel_embeds, prim))
        ref = _reference(block, x, edge_index, edge_type, rel_embeds, prim)
        good = (out.shape == (N, OUT_DIM)
                and bool(jnp.allclose(out, ref, atol=1e-2, rtol=1e-2)))
        if not good:
            ok = False
            err = (float(jnp.max(jnp.abs(out - ref)))
                   if out.shape == ref.shape else -1.0)
            print(f"MISMATCH for primitive {prim}: max_err={err}")

    if ok:
        print("KERNEL_OK")
</pallas_src>

<mosaic_0001>
module attributes {stable_mosaic.version = 11 : i64} {
  func.func @_gconv_kernel(%arg0: i32, %arg1: i32, %arg2: memref<256x64xbf16, #tpu.memory_space<vmem>>, %arg3: memref<256x64xbf16, #tpu.memory_space<vmem>>, %arg4: memref<64x128xbf16, #tpu.memory_space<vmem>>, %arg5: memref<64x128xbf16, #tpu.memory_space<vmem>>, %arg6: memref<1x128xf32, #tpu.memory_space<vmem>>, %arg7: memref<256x128xf32, #tpu.memory_space<vmem>>) attributes {dimension_semantics = [#tpu.dimension_semantics<parallel>, #tpu.dimension_semantics<parallel>], iteration_bounds = array<i64: 2, 1>, scalar_prefetch = 0 : i64, scratch_operands = 0 : i64, tpu.core_type = #tpu.core_type<tc>, window_params = [{transform_indices = @transform_0, window_bounds = array<i64: 256, 64>}, {transform_indices = @transform_1, window_bounds = array<i64: 256, 64>}, {pipeline_mode = #tpu.pipeline_mode<synchronous>, transform_indices = @transform_2, window_bounds = array<i64: 64, 128>}, {pipeline_mode = #tpu.pipeline_mode<synchronous>, transform_indices = @transform_3, window_bounds = array<i64: 64, 128>}, {pipeline_mode = #tpu.pipeline_mode<synchronous>, transform_indices = @transform_4, window_bounds = array<i64: 1, 128>}, {transform_indices = @transform_5, window_bounds = array<i64: 256, 128>}]} {
    %c0 = arith.constant 0 : index
    %c0_0 = arith.constant 0 : index
    %0 = vector.load %arg2[%c0, %c0_0] : memref<256x64xbf16, #tpu.memory_space<vmem>>, vector<256x64xbf16>
    %c0_1 = arith.constant 0 : index
    %c0_2 = arith.constant 0 : index
    %1 = vector.load %arg4[%c0_1, %c0_2] : memref<64x128xbf16, #tpu.memory_space<vmem>>, vector<64x128xbf16>
    %cst = arith.constant dense<0.000000e+00> : vector<256x128xf32>
    %2 = tpu.matmul %0, %1, %cst {dimension_numbers = #tpu.dot_dimension_numbers<[1], [0], [0], [1], [0, 0, 1, 1], [], []>} : vector<256x64xbf16>, vector<64x128xbf16>, vector<256x128xf32> -> vector<256x128xf32>
    %c0_3 = arith.constant 0 : index
    %c0_4 = arith.constant 0 : index
    %3 = vector.load %arg3[%c0_3, %c0_4] : memref<256x64xbf16, #tpu.memory_space<vmem>>, vector<256x64xbf16>
    %c0_5 = arith.constant 0 : index
    %c0_6 = arith.constant 0 : index
    %4 = vector.load %arg5[%c0_5, %c0_6] : memref<64x128xbf16, #tpu.memory_space<vmem>>, vector<64x128xbf16>
    %cst_7 = arith.constant dense<0.000000e+00> : vector<256x128xf32>
    %5 = tpu.matmul %3, %4, %cst_7 {dimension_numbers = #tpu.dot_dimension_numbers<[1], [0], [0], [1], [0, 0, 1, 1], [], []>} : vector<256x64xbf16>, vector<64x128xbf16>, vector<256x128xf32> -> vector<256x128xf32>
    %6 = arith.addf %2, %5 : vector<256x128xf32>
    %c0_8 = arith.constant 0 : index
    %c0_9 = arith.constant 0 : index
    %7 = vector.load %arg6[%c0_8, %c0_9] : memref<1x128xf32, #tpu.memory_space<vmem>>, vector<1x128xf32>
    %8 = vector.broadcast %7 : vector<1x128xf32> to vector<256x128xf32>
    %9 = arith.addf %6, %8 : vector<256x128xf32>
    %cst_10 = arith.constant 0.000000e+00 : f32
    %10 = vector.broadcast %cst_10 : f32 to vector<256x128xf32>
    %11 = arith.maximumf %9, %10 : vector<256x128xf32>
    %c0_11 = arith.constant 0 : index
    %c0_12 = arith.constant 0 : index
    %12 = vector.load %arg7[%c0_11, %c0_12] : memref<256x128xf32, #tpu.memory_space<vmem>>, vector<256x128xf32>
    tpu.vector_store %arg7[%c0_11, %c0_12], %11 {strides = array<i32>} : memref<256x128xf32, #tpu.memory_space<vmem>>, vector<256x128xf32>,
    return
  }
  func.func @transform_0(%arg0: i32, %arg1: i32) -> (i32, i32) {
    %c0_i32 = arith.constant 0 : i32
    %c0_i32_0 = arith.constant 0 : i32
    return %arg0, %c0_i32 : i32, i32
  }
  func.func @transform_1(%arg0: i32, %arg1: i32) -> (i32, i32) {
    %c0_i32 = arith.constant 0 : i32
    %c0_i32_0 = arith.constant 0 : i32
    return %arg0, %c0_i32 : i32, i32
  }
  func.func @transform_2(%arg0: i32, %arg1: i32) -> (i32, i32) {
    %c0_i32 = arith.constant 0 : i32
    %c0_i32_0 = arith.constant 0 : i32
    return %c0_i32, %arg1 : i32, i32
  }
  func.func @transform_3(%arg0: i32, %arg1: i32) -> (i32, i32) {
    %c0_i32 = arith.constant 0 : i32
    %c0_i32_0 = arith.constant 0 : i32
    return %c0_i32, %arg1 : i32, i32
  }
  func.func @transform_4(%arg0: i32, %arg1: i32) -> (i32, i32) {
    %c0_i32 = arith.constant 0 : i32
    %c0_i32_0 = arith.constant 0 : i32
    return %c0_i32, %arg1 : i32, i32
  }
  func.func @transform_5(%arg0: i32, %arg1: i32) -> (i32, i32) {
    %c0_i32 = arith.constant 0 : i32
    return %arg0, %arg1 : i32, i32
  }
}

module attributes {stable_mosaic.version = 11 : i64} {
  func.func @_gconv_kernel(%arg0: i32, %arg1: i32, %arg2: memref<256x64xbf16, #tpu.memory_space<vmem>>, %arg3: memref<256x64xbf16, #tpu.memory_space<vmem>>, %arg4: memref<64x128xbf16, #tpu.memory_space<vmem>>, %arg5: memref<64x128xbf16, #tpu.memory_space<vmem>>, %arg6: memref<1x128xf32, #tpu.memory_space<vmem>>, %arg7: memref<256x128xf32, #tpu.memory_space<vmem>>) attributes {dimension_semantics = [#tpu.dimension_semantics<parallel>, #tpu.dimension_semantics<parallel>], iteration_bounds = array<i64: 2, 1>, scalar_prefetch = 0 : i64, scratch_operands = 0 : i64, tpu.core_type = #tpu.core_type<tc>, window_params = [{transform_indices = @transform_0, window_bounds = array<i64: 256, 64>}, {transform_indices = @transform_1, window_bounds = array<i64: 256, 64>}, {transform_indices = @transform_2, window_bounds = array<i64: 64, 128>}, {transform_indices = @transform_3, window_bounds = array<i64: 64, 128>}, {transform_indices = @transform_4, window_bounds = array<i64: 1, 128>}, {transform_indices = @transform_5, window_bounds = array<i64: 256, 128>}]} {
    %c0 = arith.constant 0 : index
    %c0_0 = arith.constant 0 : index
    %0 = vector.load %arg2[%c0, %c0_0] : memref<256x64xbf16, #tpu.memory_space<vmem>>, vector<256x64xbf16>
    %c0_1 = arith.constant 0 : index
    %c0_2 = arith.constant 0 : index
    %1 = vector.load %arg4[%c0_1, %c0_2] : memref<64x128xbf16, #tpu.memory_space<vmem>>, vector<64x128xbf16>
    %cst = arith.constant dense<0.000000e+00> : vector<256x128xf32>
    %2 = tpu.matmul %0, %1, %cst {dimension_numbers = #tpu.dot_dimension_numbers<[1], [0], [0], [1], [0, 0, 1, 1], [], []>} : vector<256x64xbf16>, vector<64x128xbf16>, vector<256x128xf32> -> vector<256x128xf32>
    %c0_3 = arith.constant 0 : index
    %c0_4 = arith.constant 0 : index
    %3 = vector.load %arg3[%c0_3, %c0_4] : memref<256x64xbf16, #tpu.memory_space<vmem>>, vector<256x64xbf16>
    %c0_5 = arith.constant 0 : index
    %c0_6 = arith.constant 0 : index
    %4 = vector.load %arg5[%c0_5, %c0_6] : memref<64x128xbf16, #tpu.memory_space<vmem>>, vector<64x128xbf16>
    %cst_7 = arith.constant dense<0.000000e+00> : vector<256x128xf32>
    %5 = tpu.matmul %3, %4, %cst_7 {dimension_numbers = #tpu.dot_dimension_numbers<[1], [0], [0], [1], [0, 0, 1, 1], [], []>} : vector<256x64xbf16>, vector<64x128xbf16>, vector<256x128xf32> -> vector<256x128xf32>
    %6 = arith.addf %2, %5 : vector<256x128xf32>
    %c0_8 = arith.constant 0 : index
    %c0_9 = arith.constant 0 : index
    %7 = vector.load %arg6[%c0_8, %c0_9] : memref<1x128xf32, #tpu.memory_space<vmem>>, vector<1x128xf32>
    %8 = vector.broadcast %7 : vector<1x128xf32> to vector<256x128xf32>
    %9 = arith.addf %6, %8 : vector<256x128xf32>
    %cst_10 = arith.constant 0.000000e+00 : f32
    %10 = vector.broadcast %cst_10 : f32 to vector<256x128xf32>
    %11 = arith.maximumf %9, %10 : vector<256x128xf32>
    %c0_11 = arith.constant 0 : index
    %c0_12 = arith.constant 0 : index
    %12 = vector.load %arg7[%c0_11, %c0_12] : memref<256x128xf32, #tpu.memory_space<vmem>>, vector<256x128xf32>
    tpu.vector_store %arg7[%c0_11, %c0_12], %11 {strides = array<i32>} : memref<256x128xf32, #tpu.memory_space<vmem>>, vector<256x128xf32>,
    return
  }
  func.func @transform_0(%arg0: i32, %arg1: i32) -> (i32, i32) {
    %c0_i32 = arith.constant 0 : i32
    %c0_i32_0 = arith.constant 0 : i32
    return %arg0, %c0_i32 : i32, i32
  }
  func.func @transform_1(%arg0: i32, %arg1: i32) -> (i32, i32) {
    %c0_i32 = arith.constant 0 : i32
    %c0_i32_0 = arith.constant 0 : i32
    return %arg0, %c0_i32 : i32, i32
  }
  func.func @transform_2(%arg0: i32, %arg1: i32) -> (i32, i32) {
    %c0_i32 = arith.constant 0 : i32
    %c0_i32_0 = arith.constant 0 : i32
    return %c0_i32, %arg1 : i32, i32
  }
  func.func @transform_3(%arg0: i32, %arg1: i32) -> (i32, i32) {
    %c0_i32 = arith.constant 0 : i32
    %c0_i32_0 = arith.constant 0 : i32
    return %c0_i32, %arg1 : i32, i32
  }
  func.func @transform_4(%arg0: i32, %arg1: i32) -> (i32, i32) {
    %c0_i32 = arith.constant 0 : i32
    %c0_i32_0 = arith.constant 0 : i32
    return %c0_i32, %arg1 : i32, i32
  }
  func.func @transform_5(%arg0: i32, %arg1: i32) -> (i32, i32) {
    %c0_i32 = arith.constant 0 : i32
    return %arg0, %arg1 : i32, i32
  }
}

</mosaic_0001>

<llo_original>
// kernel: tpu_custom_call.1
$region0: #{tpu_custom_call.1}
  #allocation0 [shape = 'u32[]', space=smem, size = 0x4, offset = 0x4, fixed_abs, tag = 'smem constant byte address 0x4 - core index']
  #allocation1 [shape = 'u32[144,128]{1,0:T(1,128)}', space=vmem, size = 0x12000, scoped, tag = 'internal scratch']
  %s0 = inlined_call_operand.vmem [shape: bf16[512,64], index: 0, kind: input, shape index: {}]
  %s1 = inlined_call_operand.vmem [shape: bf16[512,64], index: 1, kind: input, shape index: {}]
  %s2 = inlined_call_operand.vmem [shape: bf16[64,128], index: 2, kind: input, shape index: {}]
  %s3 = inlined_call_operand.vmem [shape: bf16[64,128], index: 3, kind: input, shape index: {}]
  %s4 = inlined_call_operand.vmem [shape: f32[1,128], index: 4, kind: input, shape index: {}]
  %s5 = inlined_call_operand.hbm [shape: f32[512,128], index: 5, kind: output, shape index: {}]
  %s6 = sld [smem:[#allocation0]]
  $region53: #{tpu_custom_call.1} parent=0
    _
  %s8 = ssub.s32 1, %s6
  %s9 = scalar_select 0, %s8, %s6
  $region1: #{tpu_custom_call.1} parent=0
    #allocation2 [shape = 'u8[262144]{0}', space=vmem, size = 0x40000, scoped, tag = 'output window, operand 0']
    #allocation3 [shape = 's32[2]{0}', space=sflag, size = 0x8, scoped, tag = 'scoped memory for tpu_custom_call.1']
    %10 = vsyncpa [#allocation3], 0
    %s11 = scalar_lea.sflag [#allocation3], 1
    %12 = vsyncpa %s11, 0
    loop: start=0, step=1, limit=4
    $region2: #{tpu_custom_call.1} parent=1 // loop_pre_header
      _
    $region3: #{tpu_custom_call.1} parent=1 // loop_header
      %s14 = sphi 0, %s18
      %p15 = scmp.ge.s32.totalorder %s14, 4
      %s21 = sphi 0, %s33
      %s22 = sphi 0, %s29
      %s23 = sphi 0, %s21
      %s24 = sphi 0, %s22
      %s25 = sphi 0, %s23
      %s26 = sphi 0, %s24
      %s36 = sphi 0, %s38
      %s39 = sphi 0, %s36
      %s40 = sphi 0, %s39
      %s56 = sphi 0, %s40
      %s62 = sphi 0, %s64
      %s65 = sphi 0, %s62
      %s66 = sphi 0, %s65
      %s82 = sphi 0, %s66
      %s88 = sphi 0, %s90
      %s91 = sphi 0, %s88
      %s92 = sphi 0, %s91
      %s108 = sphi 0, %s92
      %s114 = sphi 0, %s116
      %s117 = sphi 0, %s114
      %s118 = sphi 0, %s117
      %s134 = sphi 0, %s118
      %s140 = sphi 0, %s142
      %s143 = sphi 0, %s140
      %s144 = sphi 0, %s143
      %s160 = sphi 0, %s144
      %s168 = sphi 0, %s170
      %s171 = sphi 0, %s168
      %s172 = sphi 0, %s171
      %s188 = sphi 0, %s172
    $region4: #{tpu_custom_call.1} parent=1 // loop_header_branch
      %17 = sbr.rel (%p15) target = $region8
    $region5: #{tpu_custom_call.1} parent=1 // loop_body
      %s19 = ssub.s32 %s14, 1
      %s20 = ssub.s32 %s14, 2
      %s27 = sadd.s32 1, %s22
      %p28 = scmp.ge.s32.totalorder %s27, 1
      %s29 = scalar_select %p28, 0, %s27
      %s30 = sadd.s32 1, %s21
      %s31 = scalar_select %p28, %s30, %s21
      %p32 = scmp.ge.s32.totalorder %s31, 2
      %s33 = scalar_select %p32, 0, %s31
      %s34 = ssub.s32 %s21, %s33
      %p35 = scmp.eq.s32.totalorder %s34, 0
      %s37 = sadd.s32 %s36, 1
      %s38 = scalar_select %p35, %s36, %s37
      %p41 = pneg %p35
      %p42 = scmp.eq.s32.totalorder %s14, 1
      %p43 = por %p41, %p42
      %p44 = scmp.ne.s32.totalorder %s36, %s39
      %p45 = scmp.eq.s32.totalorder %s14, 0
      %p46 = por %p44, %p45
      %p47 = scmp.ne.s32.totalorder %s36, %s39
      %p48 = scmp.eq.s32.totalorder %s19, 1
      %p49 = por %p47, %p48
      %p50 = scmp.ne.s32.totalorder %s39, %s40
      %p51 = scmp.eq.s32.totalorder %s19, 0
      %p52 = por %p50, %p51
      %p53 = scmp.ne.s32.totalorder %s39, %s40
      %p54 = scmp.eq.s32.totalorder %s20, 1
      %p55 = por %p53, %p54
      %p57 = scmp.ne.s32.totalorder %s40, %s56
      %p58 = scmp.eq.s32.totalorder %s20, 0
      %p59 = por %p57, %p58
      %s60 = ssub.s32 %s21, %s33
      %p61 = scmp.eq.s32.totalorder %s60, 0
      %s63 = sadd.s32 %s62, 1
      %s64 = scalar_select %p61, %s62, %s63
      %p67 = pneg %p61
      %p68 = scmp.eq.s32.totalorder %s14, 1
      %p69 = por %p67, %p68
      %p70 = scmp.ne.s32.totalorder %s62, %s65
      %p71 = scmp.eq.s32.totalorder %s14, 0
      %p72 = por %p70, %p71
      %p73 = scmp.ne.s32.totalorder %s62, %s65
      %p74 = scmp.eq.s32.totalorder %s19, 1
      %p75 = por %p73, %p74
      %p76 = scmp.ne.s32.totalorder %s65, %s66
      %p77 = scmp.eq.s32.totalorder %s19, 0
      %p78 = por %p76, %p77
      %p79 = scmp.ne.s32.totalorder %s65, %s66
      %p80 = scmp.eq.s32.totalorder %s20, 1
      %p81 = por %p79, %p80
      %p83 = scmp.ne.s32.totalorder %s66, %s82
      %p84 = scmp.eq.s32.totalorder %s20, 0
      %p85 = por %p83, %p84
      %s86 = ssub.s32 %s22, %s29
      %p87 = scmp.eq.s32.totalorder %s86, 0
      %s89 = sadd.s32 %s88, 1
      %s90 = scalar_select %p87, %s88, %s89
      %p93 = pneg %p87
      %p94 = scmp.eq.s32.totalorder %s14, 1
      %p95 = por %p93, %p94
      %p96 = scmp.ne.s32.totalorder %s88, %s91
      %p97 = scmp.eq.s32.totalorder %s14, 0
      %p98 = por %p96, %p97
      %p99 = scmp.ne.s32.totalorder %s88, %s91
      %p100 = scmp.eq.s32.totalorder %s19, 1
      %p101 = por %p99, %p100
      %p102 = scmp.ne.s32.totalorder %s91, %s92
      %p103 = scmp.eq.s32.totalorder %s19, 0
      %p104 = por %p102, %p103
      %p105 = scmp.ne.s32.totalorder %s91, %s92
      %p106 = scmp.eq.s32.totalorder %s20, 1
      %p107 = por %p105, %p106
      %p109 = scmp.ne.s32.totalorder %s92, %s108
      %p110 = scmp.eq.s32.totalorder %s20, 0
      %p111 = por %p109, %p110
      %s112 = ssub.s32 %s22, %s29
      %p113 = scmp.eq.s32.totalorder %s112, 0
      %s115 = sadd.s32 %s114, 1
      %s116 = scalar_select %p113, %s114, %s115
      %p119 = pneg %p113
      %p120 = scmp.eq.s32.totalorder %s14, 1
      %p121 = por %p119, %p120
      %p122 = scmp.ne.s32.totalorder %s114, %s117
      %p123 = scmp.eq.s32.totalorder %s14, 0
      %p124 = por %p122, %p123
      %p125 = scmp.ne.s32.totalorder %s114, %s117
      %p126 = scmp.eq.s32.totalorder %s19, 1
      %p127 = por %p125, %p126
      %p128 = scmp.ne.s32.totalorder %s117, %s118
      %p129 = scmp.eq.s32.totalorder %s19, 0
      %p130 = por %p128, %p129
      %p131 = scmp.ne.s32.totalorder %s117, %s118
      %p132 = scmp.eq.s32.totalorder %s20, 1
      %p133 = por %p131, %p132
      %p135 = scmp.ne.s32.totalorder %s118, %s134
      %p136 = scmp.eq.s32.totalorder %s20, 0
      %p137 = por %p135, %p136
      %s138 = ssub.s32 %s22, %s29
      %p139 = scmp.eq.s32.totalorder %s138, 0
      %s141 = sadd.s32 %s140, 1
      %s142 = scalar_select %p139, %s140, %s141
      %p145 = pneg %p139
      %p146 = scmp.eq.s32.totalorder %s14, 1
      %p147 = por %p145, %p146
      %p148 = scmp.ne.s32.totalorder %s140, %s143
      %p149 = scmp.eq.s32.totalorder %s14, 0
      %p150 = por %p148, %p149
      %p151 = scmp.ne.s32.totalorder %s140, %s143
      %p152 = scmp.eq.s32.totalorder %s19, 1
      %p153 = por %p151, %p152
      %p154 = scmp.ne.s32.totalorder %s143, %s144
      %p155 = scmp.eq.s32.totalorder %s19, 0
      %p156 = por %p154, %p155
      %p157 = scmp.ne.s32.totalorder %s143, %s144
      %p158 = scmp.eq.s32.totalorder %s20, 1
      %p159 = por %p157, %p158
      %p161 = scmp.ne.s32.totalorder %s144, %s160
      %p162 = scmp.eq.s32.totalorder %s20, 0
      %p163 = por %p161, %p162
      %s164 = ssub.s32 %s21, %s33
      %s165 = ssub.s32 %s22, %s29
      %s166 = sor.u32 %s164, %s165
      %p167 = scmp.eq.s32.totalorder %s166, 0
      %s169 = sadd.s32 %s168, 1
      %s170 = scalar_select %p167, %s168, %s169
      %p173 = pneg %p167
      %p174 = scmp.eq.s32.totalorder %s14, 1
      %p175 = por %p173, %p174
      %p176 = scmp.ne.s32.totalorder %s168, %s171
      %p177 = scmp.eq.s32.totalorder %s14, 0
      %p178 = por %p176, %p177
      %p179 = scmp.ne.s32.totalorder %s168, %s171
      %p180 = scmp.eq.s32.totalorder %s19, 1
      %p181 = por %p179, %p180
      %p182 = scmp.ne.s32.totalorder %s171, %s172
      %p183 = scmp.eq.s32.totalorder %s19, 0
      %p184 = por %p182, %p183
      %p185 = scmp.ne.s32.totalorder %s171, %s172
      %p186 = scmp.eq.s32.totalorder %s20, 1
      %p187 = por %p185, %p186
      %p189 = scmp.ne.s32.totalorder %s172, %s188
      %p190 = scmp.eq.s32.totalorder %s20, 0
      %p191 = por %p189, %p190
      %p192 = scmp.le.s32.totalorder 1, %s14
      %p193 = scmp.lt.s32.totalorder %s14, 3
      %p194 = pnand %p192, %p193
      %p195 = pneg %p194
      // Predicated region
      $region9: #{tpu_custom_call.1} parent=5 // pred_check
        _
      $region10: #{tpu_custom_call.1} parent=5 // pred_check_branch
        %197 = sbr.rel (%p194) target = $region12
      $region11: #{tpu_custom_call.1} parent=5 // pred_region
        %s198 = ssub.s32 %s14, 1
        // Predicated region
        $region13: #{tpu_custom_call.1} parent=11 // pred_check
          %p199 = pneg %p104
        $region14: #{tpu_custom_call.1} parent=11 // pred_check_branch
          %201 = sbr.rel (%p199) target = $region16
        $region15: #{tpu_custom_call.1} parent=11 // pred_region
          %p202 = scmp.lt.s32.totalorder %s24, 0
          %s203 = scalar_select %p202, %s24, 0
          %s204 = smul.addr %s203, 4
          %s205 = scalar_lea.vmem %s2, %s204
        $region16: #{tpu_custom_call.1} parent=11 // pred_fallthru
          _
        // Predicated region
        $region17: #{tpu_custom_call.1} parent=11 // pred_check
          %p206 = pneg %p130
        $region18: #{tpu_custom_call.1} parent=11 // pred_check_branch
          %208 = sbr.rel (%p206) target = $region20
        $region19: #{tpu_custom_call.1} parent=11 // pred_region
          %p209 = scmp.lt.s32.totalorder %s24, 0
          %s210 = scalar_select %p209, %s24, 0
          %s211 = smul.addr %s210, 4
          %s212 = scalar_lea.vmem %s3, %s211
        $region20: #{tpu_custom_call.1} parent=11 // pred_fallthru
          _
        // Predicated region
        $region21: #{tpu_custom_call.1} parent=11 // pred_check
          %p213 = pneg %p156
        $region22: #{tpu_custom_call.1} parent=11 // pred_check_branch
          %215 = sbr.rel (%p213) target = $region24
        $region23: #{tpu_custom_call.1} parent=11 // pred_region
          %p216 = scmp.lt.s32.totalorder %s24, 0
          %s217 = scalar_select %p216, %s24, 0
          %s218 = scalar_lea.vmem %s4, %s217
        $region24: #{tpu_custom_call.1} parent=11 // pred_fallthru
          _
      $region12: #{tpu_custom_call.1} parent=5 // pred_fallthru
        _
      %p219 = scmp.lt.s32.totalorder %s14, 2
      // Predicated region
      $region25: #{tpu_custom_call.1} parent=5 // pred_check
        %p220 = pneg %p219
      $region26: #{tpu_custom_call.1} parent=5 // pred_check_branch
        %222 = sbr.rel (%p220) target = $region28
      $region27: #{tpu_custom_call.1} parent=5 // pred_region
        // Predicated region
        $region29: #{tpu_custom_call.1} parent=27 // pred_check
          %p223 = pneg %p46
        $region30: #{tpu_custom_call.1} parent=27 // pred_check_branch
          %225 = sbr.rel (%p223) target = $region32
        $region31: #{tpu_custom_call.1} parent=27 // pred_region
          %s226 = smul.u32 32, %s21
          %p227 = scmp.lt.s32.totalorder %s226, 63
          %s228 = scalar_select %p227, %s226, 63
          %s229 = smul.addr %s228, 4
          %s230 = scalar_lea.vmem %s0, %s229
          %s231 = smul.u32 32, %s21
        $region32: #{tpu_custom_call.1} parent=27 // pred_fallthru
          _
        // Predicated region
        $region33: #{tpu_custom_call.1} parent=27 // pred_check
          %p232 = pneg %p72
        $region34: #{tpu_custom_call.1} parent=27 // pred_check_branch
          %234 = sbr.rel (%p232) target = $region36
        $region35: #{tpu_custom_call.1} parent=27 // pred_region
          %s235 = smul.u32 32, %s21
          %p236 = scmp.lt.s32.totalorder %s235, 63
          %s237 = scalar_select %p236, %s235, 63
          %s238 = smul.addr %s237, 4
          %s239 = scalar_lea.vmem %s1, %s238
          %s240 = smul.u32 32, %s21
        $region36: #{tpu_custom_call.1} parent=27 // pred_fallthru
          _
      $region28: #{tpu_custom_call.1} parent=5 // pred_fallthru
        _
      %p241 = scmp.le.s32.totalorder 1, %s14
      %p242 = scmp.lt.s32.totalorder %s14, 3
      %p243 = pnand %p241, %p242
      %p244 = pneg %p243
      // Predicated region
      $region37: #{tpu_custom_call.1} parent=5 // pred_check
        _
      $region38: #{tpu_custom_call.1} parent=5 // pred_check_branch
        %246 = sbr.rel (%p243) target = $region40
      $region39: #{tpu_custom_call.1} parent=5 // pred_region
        %s247 = ssub.s32 %s14, 1
        %s248 = smul.u32 32, %s23
        %p249 = scmp.lt.s32.totalorder %s248, 63
        %s250 = scalar_select %p249, %s248, 63
        %s251 = smul.addr %s250, 4
        %s252 = scalar_lea.vmem %s0, %s251
        %p253 = pneg %p52
        %p254 = pneg %p49
        %s255 = smul.u32 32, %s23
        %p256 = scmp.lt.s32.totalorder %s255, 63
        %s257 = scalar_select %p256, %s255, 63
        %s258 = smul.addr %s257, 4
        %s259 = scalar_lea.vmem %s1, %s258
        %p260 = pneg %p78
        %p261 = pneg %p75
        %p262 = scmp.lt.s32.totalorder %s24, 0
        %s263 = scalar_select %p262, %s24, 0
        %s264 = smul.addr %s263, 4
        %s265 = scalar_lea.vmem %s2, %s264
        %p266 = pneg %p104
        %p267 = pneg %p101
        %p268 = scmp.lt.s32.totalorder %s24, 0
        %s269 = scalar_select %p268, %s24, 0
        %s270 = smul.addr %s269, 4
        %s271 = scalar_lea.vmem %s3, %s270
        %p272 = pneg %p130
        %p273 = pneg %p127
        %p274 = scmp.lt.s32.totalorder %s24, 0
        %s275 = scalar_select %p274, %s24, 0
        %s276 = scalar_lea.vmem %s4, %s275
        %p277 = pneg %p156
        %p278 = pneg %p153
        %p279 = pneg %p184
        %p280 = pneg %p181
        %s281 = sand.u32 %s171, 1
        %s282 = scalar_lea.sflag [#allocation3], %s281
        %s283 = sand.u32 %s171, 1
        %s284 = smul.addr %s283, 256
        %s285 = scalar_lea.vmem [#allocation2], %s284
        %s286 = smul.u32 32, %s23
        %p287 = scmp.lt.s32.totalorder %s286, 63
        %s288 = scalar_select %p287, %s286, 63
        %s289 = smul.addr %s288, 4
        %s290 = scalar_lea.vmem %s0, %s289
        %s291 = smul.u32 32, %s23
        %s292 = smul.u32 32, %s23
        %p293 = scmp.lt.s32.totalorder %s292, 63
        %s294 = scalar_select %p293, %s292, 63
        %s295 = smul.addr %s294, 4
        %s296 = scalar_lea.vmem %s1, %s295
        %s297 = smul.u32 32, %s23
        %p298 = scmp.lt.s32.totalorder %s24, 0
        %s299 = scalar_select %p298, %s24, 0
        %s300 = smul.addr %s299, 4
        %s301 = scalar_lea.vmem %s2, %s300
        %p302 = scmp.lt.s32.totalorder %s24, 0
        %s303 = scalar_select %p302, %s24, 0
        %s304 = smul.addr %s303, 4
        %s305 = scalar_lea.vmem %s3, %s304
        %p306 = scmp.lt.s32.totalorder %s24, 0
        %s307 = scalar_select %p306, %s24, 0
        %s308 = scalar_lea.vmem %s4, %s307
        %s309 = smul.u32 32, %s23
        %v311 = vld [vmem:[%s290] sm:$0xf]
        %v312 = vld [vmem:[%s290 + $0x4] sm:$0xf]
        %v313 = vld [vmem:[%s290 + $0x8] sm:$0xf]
        %v314 = vld [vmem:[%s290 + $0xc] sm:$0xf]
        %v315 = vld [vmem:[%s290 + $0x10] sm:$0xf]
        %v316 = vld [vmem:[%s290 + $0x14] sm:$0xf]
        %v317 = vld [vmem:[%s290 + $0x18] sm:$0xf]
        %v318 = vld [vmem:[%s290 + $0x1c] sm:$0xf]
        %v319 = vld [vmem:[%s290 + $0x20] sm:$0xf]
        %v320 = vld [vmem:[%s290 + $0x24] sm:$0xf]
        %v321 = vld [vmem:[%s290 + $0x28] sm:$0xf]
        %v322 = vld [vmem:[%s290 + $0x2c] sm:$0xf]
        %v323 = vld [vmem:[%s290 + $0x30] sm:$0xf]
        %v324 = vld [vmem:[%s290 + $0x34] sm:$0xf]
        %v325 = vld [vmem:[%s290 + $0x38] sm:$0xf]
        %v326 = vld [vmem:[%s290 + $0x3c] sm:$0xf]
        %v327 = vld [vmem:[%s290 + $0x40] sm:$0xf]
        %v328 = vld [vmem:[%s290 + $0x44] sm:$0xf]
        %v329 = vld [vmem:[%s290 + $0x48] sm:$0xf]
        %v330 = vld [vmem:[%s290 + $0x4c] sm:$0xf]
        %v331 = vld [vmem:[%s290 + $0x50] sm:$0xf]
        %v332 = vld [vmem:[%s290 + $0x54] sm:$0xf]
        %v333 = vld [vmem:[%s290 + $0x58] sm:$0xf]
        %v334 = vld [vmem:[%s290 + $0x5c] sm:$0xf]
        %v335 = vld [vmem:[%s290 + $0x60] sm:$0xf]
        %v336 = vld [vmem:[%s290 + $0x64] sm:$0xf]
        %v337 = vld [vmem:[%s290 + $0x68] sm:$0xf]
        %v338 = vld [vmem:[%s290 + $0x6c] sm:$0xf]
        %v339 = vld [vmem:[%s290 + $0x70] sm:$0xf]
        %v340 = vld [vmem:[%s290 + $0x74] sm:$0xf]
        %v341 = vld [vmem:[%s290 + $0x78] sm:$0xf]
        %v342 = vld [vmem:[%s290 + $0x7c] sm:$0xf]
        %v343 = vld [vmem:[%s301] sm:$0xf]
        %v344 = vld [vmem:[%s301 + $0x4] sm:$0xf]
        %v345 = vld [vmem:[%s301 + $0x8] sm:$0xf]
        %v346 = vld [vmem:[%s301 + $0xc] sm:$0xf]
        %v347 = vld [vmem:[%s301 + $0x10] sm:$0xf]
        %v348 = vld [vmem:[%s301 + $0x14] sm:$0xf]
        %v349 = vld [vmem:[%s301 + $0x18] sm:$0xf]
        %v350 = vld [vmem:[%s301 + $0x1c] sm:$0xf]
        %v351 = vld [vmem:[%s296] sm:$0xf]
        %v352 = vld [vmem:[%s296 + $0x4] sm:$0xf]
        %v353 = vld [vmem:[%s296 + $0x8] sm:$0xf]
        %v354 = vld [vmem:[%s296 + $0xc] sm:$0xf]
        %v355 = vld [vmem:[%s296 + $0x10] sm:$0xf]
        %v356 = vld [vmem:[%s296 + $0x14] sm:$0xf]
        %v357 = vld [vmem:[%s296 + $0x18] sm:$0xf]
        %v358 = vld [vmem:[%s296 + $0x1c] sm:$0xf]
        %v359 = vld [vmem:[%s296 + $0x20] sm:$0xf]
        %v360 = vld [vmem:[%s296 + $0x24] sm:$0xf]
        %v361 = vld [vmem:[%s296 + $0x28] sm:$0xf]
        %v362 = vld [vmem:[%s296 + $0x2c] sm:$0xf]
        %v363 = vld [vmem:[%s296 + $0x30] sm:$0xf]
        %v364 = vld [vmem:[%s296 + $0x34] sm:$0xf]
        %v365 = vld [vmem:[%s296 + $0x38] sm:$0xf]
        %v366 = vld [vmem:[%s296 + $0x3c] sm:$0xf]
        %v367 = vld [vmem:[%s296 + $0x40] sm:$0xf]
        %v368 = vld [vmem:[%s296 + $0x44] sm:$0xf]
        %v369 = vld [vmem:[%s296 + $0x48] sm:$0xf]
        %v370 = vld [vmem:[%s296 + $0x4c] sm:$0xf]
        %v371 = vld [vmem:[%s296 + $0x50] sm:$0xf]
        %v372 = vld [vmem:[%s296 + $0x54] sm:$0xf]
        %v373 = vld [vmem:[%s296 + $0x58] sm:$0xf]
        %v374 = vld [vmem:[%s296 + $0x5c] sm:$0xf]
        %v375 = vld [vmem:[%s296 + $0x60] sm:$0xf]
        %v376 = vld [vmem:[%s296 + $0x64] sm:$0xf]
        %v377 = vld [vmem:[%s296 + $0x68] sm:$0xf]
        %v378 = vld [vmem:[%s296 + $0x6c] sm:$0xf]
        %v379 = vld [vmem:[%s296 + $0x70] sm:$0xf]
        %v380 = vld [vmem:[%s296 + $0x74] sm:$0xf]
        %v381 = vld [vmem:[%s296 + $0x78] sm:$0xf]
        %v382 = vld [vmem:[%s296 + $0x7c] sm:$0xf]
        %v383 = vld [vmem:[%s305] sm:$0xf]
        %v384 = vld [vmem:[%s305 + $0x4] sm:$0xf]
        %v385 = vld [vmem:[%s305 + $0x8] sm:$0xf]
        %v386 = vld [vmem:[%s305 + $0xc] sm:$0xf]
        %v387 = vld [vmem:[%s305 + $0x10] sm:$0xf]
        %v388 = vld [vmem:[%s305 + $0x14] sm:$0xf]
        %v389 = vld [vmem:[%s305 + $0x18] sm:$0xf]
        %v390 = vld [vmem:[%s305 + $0x1c] sm:$0xf]
        %v423 = vunpack.c.l.b16 %v351
        %v424 = vunpack.c.l.b16 %v352
        %v425 = vunpack.c.l.b16 %v353
        %v426 = vunpack.c.l.b16 %v354
        %v427 = vunpack.c.l.b16 %v355
        %v428 = vunpack.c.l.b16 %v356
        %v429 = vunpack.c.l.b16 %v357
        %v430 = vunpack.c.l.b16 %v358
        %v431 = vunpack.c.l.b16 %v359
        %v432 = vunpack.c.l.b16 %v360
        %v433 = vunpack.c.l.b16 %v361
        %v434 = vunpack.c.l.b16 %v362
        %v435 = vunpack.c.l.b16 %v363
        %v436 = vunpack.c.l.b16 %v364
        %v437 = vunpack.c.l.b16 %v365
        %v438 = vunpack.c.l.b16 %v366
        %v439 = vunpack.c.l.b16 %v367
        %v440 = vunpack.c.l.b16 %v368
        %v441 = vunpack.c.l.b16 %v369
        %v442 = vunpack.c.l.b16 %v370
        %v443 = vunpack.c.l.b16 %v371
        %v444 = vunpack.c.l.b16 %v372
        %v445 = vunpack.c.l.b16 %v373
        %v446 = vunpack.c.l.b16 %v374
        %v447 = vunpack.c.l.b16 %v375
        %v448 = vunpack.c.l.b16 %v376
        %v449 = vunpack.c.l.b16 %v377
        %v450 = vunpack.c.l.b16 %v378
        %v451 = vunpack.c.l.b16 %v379
        %v452 = vunpack.c.l.b16 %v380
        %v453 = vunpack.c.l.b16 %v381
        %v454 = vunpack.c.l.b16 %v382
        %v455 = vpack.c.b16 %v424, %v423
        %v456 = vpack.c.b16 %v426, %v425
        %v457 = vpack.c.b16 %v428, %v427
        %v458 = vpack.c.b16 %v430, %v429
        %v459 = vpack.c.b16 %v432, %v431
        %v460 = vpack.c.b16 %v434, %v433
        %v461 = vpack.c.b16 %v436, %v435
        %v462 = vpack.c.b16 %v438, %v437
        %v463 = vpack.c.b16 %v440, %v439
        %v464 = vpack.c.b16 %v442, %v441
        %v465 = vpack.c.b16 %v444, %v443
        %v466 = vpack.c.b16 %v446, %v445
        %v467 = vpack.c.b16 %v448, %v447
        %v468 = vpack.c.b16 %v450, %v449
        %v469 = vpack.c.b16 %v452, %v451
        %v470 = vpack.c.b16 %v454, %v453
        %v479 = vunpack.c.l.b16 %v383
        %v480 = vunpack.c.l.b16 %v384
        %v481 = vunpack.c.l.b16 %v385
        %v482 = vunpack.c.l.b16 %v386
        %v483 = vunpack.c.l.b16 %v387
        %v484 = vunpack.c.l.b16 %v388
        %v485 = vunpack.c.l.b16 %v389
        %v486 = vunpack.c.l.b16 %v390
        %v487 = vpack.c.b16 %v480, %v479
        %v488 = vpack.c.b16 %v482, %v481
        %v489 = vpack.c.b16 %v484, %v483
        %v490 = vpack.c.b16 %v486, %v485
        %vm495 = vcmask 523264
        %v497 = vsel %vm495, %v455, 0
        %v500 = vsel %vm495, %v456, 0
        %v503 = vsel %vm495, %v457, 0
        %v506 = vsel %vm495, %v458, 0
        %v509 = vsel %vm495, %v459, 0
        %v512 = vsel %vm495, %v460, 0
        %v515 = vsel %vm495, %v461, 0
        %v518 = vsel %vm495, %v462, 0
        %v521 = vsel %vm495, %v463, 0
        %v524 = vsel %vm495, %v464, 0
        %v527 = vsel %vm495, %v465, 0
        %v530 = vsel %vm495, %v466, 0
        %v533 = vsel %vm495, %v467, 0
        %v536 = vsel %vm495, %v468, 0
        %v539 = vsel %vm495, %v469, 0
        %v542 = vsel %vm495, %v470, 0
        %544 = vmatprep.subr.bf16.mxu0 0
        %545 = vmatpush1.bf16.msra.mxu0 %v487
        %546 = vmatprep.subr.bf16.mxu0 0
        %547 = vmatpush1.bf16.msra.mxu0 %v488
        %548 = vmatprep.subr.bf16.mxu0 0
        %549 = vmatpush1.bf16.msra.mxu0 %v489
        %550 = vmatprep.subr.bf16.mxu0 0
        %551 = vmatpush1.bf16.msra.mxu0 %v490
        %552 = vmatprep.subr.bf16.mxu0 0
        %553 = vmatpush1.bf16.msra.mxu0 0
        %554 = vmatprep.subr.bf16.mxu0 0
        %555 = vmatpush1.bf16.msra.mxu0 0
        %556 = vmatprep.subr.bf16.mxu0 0
        %557 = vmatpush1.bf16.msra.mxu0 0
        %558 = vmatprep.subr.bf16.mxu0 0
        %559 = vmatpush1.bf16.msra.mxu0 0
        %560 = vmatprep.subr.bf16.mxu0 0
        %561 = vmatpush1.bf16.msra.mxu0 0
        %562 = vmatprep.subr.bf16.mxu0 0
        %563 = vmatpush1.bf16.msra.mxu0 0
        %564 = vmatprep.subr.bf16.mxu0 0
        %565 = vmatpush1.bf16.msra.mxu0 0
        %566 = vmatprep.subr.bf16.mxu0 0
        %567 = vmatpush1.bf16.msra.mxu0 0
        %568 = vmatprep.subr.bf16.mxu0 0
        %569 = vmatpush1.bf16.msra.mxu0 0
        %570 = vmatprep.subr.bf16.mxu0 0
        %571 = vmatpush1.bf16.msra.mxu0 0
        %572 = vmatprep.subr.bf16.mxu0 0
        %573 = vmatpush1.bf16.msra.mxu0 0
        %574 = vmatprep.subr.bf16.mxu0 0
        %575 = vmatpush1.bf16.msra.mxu0 0
        %576 = vmatprep.mubr.bf16.mxu0 0
        %577 = vmatmul.mubr.bf16.gmra.mrb[0].mxu0 %v497
        %v578 = vpop.f32.mrb[0].mxu0
        %v579 = vadd.f32 0.0, %v578
        %v580 = vpop.f32.mrb[0].mxu0
        %v581 = vpop.f32.mrb[0].mxu0
        %v582 = vadd.f32 0.0, %v581
        %v583 = vpop.f32.mrb[0].mxu0
        %584 = vmatprep.mubr.bf16.mxu0 0
        %585 = vmatmul.mubr.bf16.gmra.mrb[0].mxu0 %v500
        %v586 = vpop.f32.mrb[0].mxu0
        %v587 = vadd.f32 0.0, %v586
        %v588 = vpop.f32.mrb[0].mxu0
        %v589 = vpop.f32.mrb[0].mxu0
        %v590 = vadd.f32 0.0, %v589
        %v591 = vpop.f32.mrb[0].mxu0
        %592 = vmatprep.mubr.bf16.mxu0 0
        %593 = vmatmul.mubr.bf16.gmra.mrb[0].mxu0 %v503
        %v594 = vpop.f32.mrb[0].mxu0
        %v595 = vadd.f32 0.0, %v594
        %v596 = vpop.f32.mrb[0].mxu0
        %v597 = vpop.f32.mrb[0].mxu0
        %v598 = vadd.f32 0.0, %v597
        %v599 = vpop.f32.mrb[0].mxu0
        %600 = vmatprep.mubr.bf16.mxu0 0
        %601 = vmatmul.mubr.bf16.gmra.mrb[0].mxu0 %v506
        %v602 = vpop.f32.mrb[0].mxu0
        %v603 = vadd.f32 0.0, %v602
        %v604 = vpop.f32.mrb[0].mxu0
        %v605 = vpop.f32.mrb[0].mxu0
        %v606 = vadd.f32 0.0, %v605
        %v607 = vpop.f32.mrb[0].mxu0
        %608 = vmatprep.mubr.bf16.mxu0 0
        %609 = vmatmul.mubr.bf16.gmra.mrb[0].mxu0 %v509
        %v610 = vpop.f32.mrb[0].mxu0
        %v611 = vadd.f32 0.0, %v610
        %v612 = vpop.f32.mrb[0].mxu0
        %v613 = vpop.f32.mrb[0].mxu0
        %v614 = vadd.f32 0.0, %v613
        %v615 = vpop.f32.mrb[0].mxu0
        %616 = vmatprep.mubr.bf16.mxu0 0
        %617 = vmatmul.mubr.bf16.gmra.mrb[0].mxu0 %v512
        %v618 = vpop.f32.mrb[0].mxu0
        %v619 = vadd.f32 0.0, %v618
        %v620 = vpop.f32.mrb[0].mxu0
        %v621 = vpop.f32.mrb[0].mxu0
        %v622 = vadd.f32 0.0, %v621
        %v623 = vpop.f32.mrb[0].mxu0
        %624 = vmatprep.mubr.bf16.mxu0 0
        %625 = vmatmul.mubr.bf16.gmra.mrb[0].mxu0 %v515
        %v626 = vpop.f32.mrb[0].mxu0
        %v627 = vadd.f32 0.0, %v626
        %v628 = vpop.f32.mrb[0].mxu0
        %v629 = vpop.f32.mrb[0].mxu0
        %v630 = vadd.f32 0.0, %v629
        %v631 = vpop.f32.mrb[0].mxu0
        %632 = vmatprep.mubr.bf16.mxu0 0
        %633 = vmatmul.mubr.bf16.gmra.mrb[0].mxu0 %v518
        %v634 = vpop.f32.mrb[0].mxu0
        %v635 = vadd.f32 0.0, %v634
        %v636 = vpop.f32.mrb[0].mxu0
        %v637 = vpop.f32.mrb[0].mxu0
        %v638 = vadd.f32 0.0, %v637
        %v639 = vpop.f32.mrb[0].mxu0
        %640 = vmatprep.mubr.bf16.mxu0 0
        %641 = vmatmul.mubr.bf16.gmra.mrb[0].mxu0 %v521
        %v642 = vpop.f32.mrb[0].mxu0
        %v643 = vadd.f32 0.0, %v642
        %v644 = vpop.f32.mrb[0].mxu0
        %v645 = vpop.f32.mrb[0].mxu0
        %v646 = vadd.f32 0.0, %v645
        %v647 = vpop.f32.mrb[0].mxu0
        %648 = vmatprep.mubr.bf16.mxu0 0
        %649 = vmatmul.mubr.bf16.gmra.mrb[0].mxu0 %v524
        %v650 = vpop.f32.mrb[0].mxu0
        %v651 = vadd.f32 0.0, %v650
        %v652 = vpop.f32.mrb[0].mxu0
        %v653 = vpop.f32.mrb[0].mxu0
        %v654 = vadd.f32 0.0, %v653
        %v655 = vpop.f32.mrb[0].mxu0
        %656 = vmatprep.mubr.bf16.mxu0 0
        %657 = vmatmul.mubr.bf16.gmra.mrb[0].mxu0 %v527
        %v658 = vpop.f32.mrb[0].mxu0
        %v659 = vadd.f32 0.0, %v658
        %v660 = vpop.f32.mrb[0].mxu0
        %v661 = vpop.f32.mrb[0].mxu0
        %v662 = vadd.f32 0.0, %v661
        %v663 = vpop.f32.mrb[0].mxu0
        %664 = vmatprep.mubr.bf16.mxu0 0
        %665 = vmatmul.mubr.bf16.gmra.mrb[0].mxu0 %v530
        %v666 = vpop.f32.mrb[0].mxu0
        %v667 = vadd.f32 0.0, %v666
        %v668 = vpop.f32.mrb[0].mxu0
        %v669 = vpop.f32.mrb[0].mxu0
        %v670 = vadd.f32 0.0, %v669
        %v671 = vpop.f32.mrb[0].mxu0
        %672 = vmatprep.mubr.bf16.mxu0 0
        %673 = vmatmul.mubr.bf16.gmra.mrb[0].mxu0 %v533
        %v674 = vpop.f32.mrb[0].mxu0
        %v675 = vadd.f32 0.0, %v674
        %v676 = vpop.f32.mrb[0].mxu0
        %v677 = vpop.f32.mrb[0].mxu0
        %v678 = vadd.f32 0.0, %v677
        %v679 = vpop.f32.mrb[0].mxu0
        %680 = vmatprep.mubr.bf16.mxu0 0
        %681 = vmatmul.mubr.bf16.gmra.mrb[0].mxu0 %v536
        %v682 = vpop.f32.mrb[0].mxu0
        %v683 = vadd.f32 0.0, %v682
        %v684 = vpop.f32.mrb[0].mxu0
        %v685 = vpop.f32.mrb[0].mxu0
        %v686 = vadd.f32 0.0, %v685
        %v687 = vpop.f32.mrb[0].mxu0
        %688 = vmatprep.mubr.bf16.mxu0 0
        %689 = vmatmul.mubr.bf16.gmra.mrb[0].mxu0 %v539
        %v690 = vpop.f32.mrb[0].mxu0
        %v691 = vadd.f32 0.0, %v690
        %v692 = vpop.f32.mrb[0].mxu0
        %v693 = vpop.f32.mrb[0].mxu0
        %v694 = vadd.f32 0.0, %v693
        %v695 = vpop.f32.mrb[0].mxu0
        %696 = vmatprep.mubr.bf16.mxu0 0
        %697 = vmatmul.mubr.bf16.gmra.mrb[0].mxu0 %v542
        %v698 = vpop.f32.mrb[0].mxu0
        %v699 = vadd.f32 0.0, %v698
        %v700 = vpop.f32.mrb[0].mxu0
        %v701 = vpop.f32.mrb[0].mxu0
        %v702 = vadd.f32 0.0, %v701
        %v703 = vpop.f32.mrb[0].mxu0
        %704 = vdwg.mxu0
        %v737 = vunpack.c.l.b16 %v311
        %v738 = vunpack.c.l.b16 %v312
        %v739 = vunpack.c.l.b16 %v313
        %v740 = vunpack.c.l.b16 %v314
        %v741 = vunpack.c.l.b16 %v315
        %v742 = vunpack.c.l.b16 %v316
        %v743 = vunpack.c.l.b16 %v317
        %v744 = vunpack.c.l.b16 %v318
        %v745 = vunpack.c.l.b16 %v319
        %v746 = vunpack.c.l.b16 %v320
        %v747 = vunpack.c.l.b16 %v321
        %v748 = vunpack.c.l.b16 %v322
        %v749 = vunpack.c.l.b16 %v323
        %v750 = vunpack.c.l.b16 %v324
        %v751 = vunpack.c.l.b16 %v325
        %v752 = vunpack.c.l.b16 %v326
        %v753 = vunpack.c.l.b16 %v327
        %v754 = vunpack.c.l.b16 %v328
        %v755 = vunpack.c.l.b16 %v329
        %v756 = vunpack.c.l.b16 %v330
        %v757 = vunpack.c.l.b16 %v331
        %v758 = vunpack.c.l.b16 %v332
        %v759 = vunpack.c.l.b16 %v333
        %v760 = vunpack.c.l.b16 %v334
        %v761 = vunpack.c.l.b16 %v335
        %v762 = vunpack.c.l.b16 %v336
        %v763 = vunpack.c.l.b16 %v337
        %v764 = vunpack.c.l.b16 %v338
        %v765 = vunpack.c.l.b16 %v339
        %v766 = vunpack.c.l.b16 %v340
        %v767 = vunpack.c.l.b16 %v341
        %v768 = vunpack.c.l.b16 %v342
        %v769 = vpack.c.b16 %v738, %v737
        %v770 = vpack.c.b16 %v740, %v739
        %v771 = vpack.c.b16 %v742, %v741
        %v772 = vpack.c.b16 %v744, %v743
        %v773 = vpack.c.b16 %v746, %v745
        %v774 = vpack.c.b16 %v748, %v747
        %v775 = vpack.c.b16 %v750, %v749
        %v776 = vpack.c.b16 %v752, %v751
        %v777 = vpack.c.b16 %v754, %v753
        %v778 = vpack.c.b16 %v756, %v755
        %v779 = vpack.c.b16 %v758, %v757
        %v780 = vpack.c.b16 %v760, %v759
        %v781 = vpack.c.b16 %v762, %v761
        %v782 = vpack.c.b16 %v764, %v763
        %v783 = vpack.c.b16 %v766, %v765
        %v784 = vpack.c.b16 %v768, %v767
        %v793 = vunpack.c.l.b16 %v343
        %v794 = vunpack.c.l.b16 %v344
        %v795 = vunpack.c.l.b16 %v345
        %v796 = vunpack.c.l.b16 %v346
        %v797 = vunpack.c.l.b16 %v347
        %v798 = vunpack.c.l.b16 %v348
        %v799 = vunpack.c.l.b16 %v349
        %v800 = vunpack.c.l.b16 %v350
        %v801 = vpack.c.b16 %v794, %v793
        %v802 = vpack.c.b16 %v796, %v795
        %v803 = vpack.c.b16 %v798, %v797
        %v804 = vpack.c.b16 %v800, %v799
        %v810 = vsel %vm495, %v769, 0
        %v813 = vsel %vm495, %v770, 0
        %v816 = vsel %vm495, %v771, 0
        %v819 = vsel %vm495, %v772, 0
        %v822 = vsel %vm495, %v773, 0
        %v825 = vsel %vm495, %v774, 0
        %v828 = vsel %vm495, %v775, 0
        %v831 = vsel %vm495, %v776, 0
        %v834 = vsel %vm495, %v777, 0
        %v837 = vsel %vm495, %v778, 0
        %v840 = vsel %vm495, %v779, 0
        %v843 = vsel %vm495, %v780, 0
        %v846 = vsel %vm495, %v781, 0
        %v849 = vsel %vm495, %v782, 0
        %v852 = vsel %vm495, %v783, 0
        %v855 = vsel %vm495, %v784, 0
        %857 = vmatprep.subr.bf16.mxu0 0
        %858 = vmatpush1.bf16.msra.mxu0 %v801
        %859 = vmatprep.subr.bf16.mxu0 0
        %860 = vmatpush1.bf16.msra.mxu0 %v802
        %861 = vmatprep.subr.bf16.mxu0 0
        %862 = vmatpush1.bf16.msra.mxu0 %v803
        %863 = vmatprep.subr.bf16.mxu0 0
        %864 = vmatpush1.bf16.msra.mxu0 %v804
        %865 = vmatprep.subr.bf16.mxu0 0
        %866 = vmatpush1.bf16.msra.mxu0 0
        %867 = vmatprep.subr.bf16.mxu0 0
        %868 = vmatpush1.bf16.msra.mxu0 0
        %869 = vmatprep.subr.bf16.mxu0 0
        %870 = vmatpush1.bf16.msra.mxu0 0
        %871 = vmatprep.subr.bf16.mxu0 0
        %872 = vmatpush1.bf16.msra.mxu0 0
        %873 = vmatprep.subr.bf16.mxu0 0
        %874 = vmatpush1.bf16.msra.mxu0 0
        %875 = vmatprep.subr.bf16.mxu0 0
        %876 = vmatpush1.bf16.msra.mxu0 0
        %877 = vmatprep.subr.bf16.mxu0 0
        %878 = vmatpush1.bf16.msra.mxu0 0
        %879 = vmatprep.subr.bf16.mxu0 0
        %880 = vmatpush1.bf16.msra.mxu0 0
        %881 = vmatprep.subr.bf16.mxu0 0
        %882 = vmatpush1.bf16.msra.mxu0 0
        %883 = vmatprep.subr.bf16.mxu0 0
        %884 = vmatpush1.bf16.msra.mxu0 0
        %885 = vmatprep.subr.bf16.mxu0 0
        %886 = vmatpush1.bf16.msra.mxu0 0
        %887 = vmatprep.subr.bf16.mxu0 0
        %888 = vmatpush1.bf16.msra.mxu0 0
        %889 = vmatprep.mubr.bf16.mxu0 0
        %890 = vmatmul.mubr.bf16.gmra.mrb[0].mxu0 %v810
        %v891 = vpop.f32.mrb[0].mxu0
        %v892 = vadd.f32 %v579, %v891
        %v893 = vpop.f32.mrb[0].mxu0
        %v894 = vpop.f32.mrb[0].mxu0
        %v895 = vadd.f32 %v582, %v894
        %v896 = vpop.f32.mrb[0].mxu0
        %897 = vmatprep.mubr.bf16.mxu0 0
        %898 = vmatmul.mubr.bf16.gmra.mrb[0].mxu0 %v813
        %v899 = vpop.f32.mrb[0].mxu0
        %v900 = vadd.f32 %v587, %v899
        %v901 = vpop.f32.mrb[0].mxu0
        %v902 = vpop.f32.mrb[0].mxu0
        %v903 = vadd.f32 %v590, %v902
        %v904 = vpop.f32.mrb[0].mxu0
        %905 = vmatprep.mubr.bf16.mxu0 0
        %906 = vmatmul.mubr.bf16.gmra.mrb[0].mxu0 %v816
        %v907 = vpop.f32.mrb[0].mxu0
        %v908 = vadd.f32 %v595, %v907
        %v909 = vpop.f32.mrb[0].mxu0
        %v910 = vpop.f32.mrb[0].mxu0
        %v911 = vadd.f32 %v598, %v910
        %v912 = vpop.f32.mrb[0].mxu0
        %913 = vmatprep.mubr.bf16.mxu0 0
        %914 = vmatmul.mubr.bf16.gmra.mrb[0].mxu0 %v819
        %v915 = vpop.f32.mrb[0].mxu0
        %v916 = vadd.f32 %v603, %v915
        %v917 = vpop.f32.mrb[0].mxu0
        %v918 = vpop.f32.mrb[0].mxu0
        %v919 = vadd.f32 %v606, %v918
        %v920 = vpop.f32.mrb[0].mxu0
        %921 = vmatprep.mubr.bf16.mxu0 0
        %922 = vmatmul.mubr.bf16.gmra.mrb[0].mxu0 %v822
        %v923 = vpop.f32.mrb[0].mxu0
        %v924 = vadd.f32 %v611, %v923
        %v925 = vpop.f32.mrb[0].mxu0
        %v926 = vpop.f32.mrb[0].mxu0
        %v927 = vadd.f32 %v614, %v926
        %v928 = vpop.f32.mrb[0].mxu0
        %929 = vmatprep.mubr.bf16.mxu0 0
        %930 = vmatmul.mubr.bf16.gmra.mrb[0].mxu0 %v825
        %v931 = vpop.f32.mrb[0].mxu0
        %v932 = vadd.f32 %v619, %v931
        %v933 = vpop.f32.mrb[0].mxu0
        %v934 = vpop.f32.mrb[0].mxu0
        %v935 = vadd.f32 %v622, %v934
        %v936 = vpop.f32.mrb[0].mxu0
        %937 = vmatprep.mubr.bf16.mxu0 0
        %938 = vmatmul.mubr.bf16.gmra.mrb[0].mxu0 %v828
        %v939 = vpop.f32.mrb[0].mxu0
        %v940 = vadd.f32 %v627, %v939
        %v941 = vpop.f32.mrb[0].mxu0
        %v942 = vpop.f32.mrb[0].mxu0
        %v943 = vadd.f32 %v630, %v942
        %v944 = vpop.f32.mrb[0].mxu0
        %945 = vmatprep.mubr.bf16.mxu0 0
        %946 = vmatmul.mubr.bf16.gmra.mrb[0].mxu0 %v831
        %v947 = vpop.f32.mrb[0].mxu0
        %v948 = vadd.f32 %v635, %v947
        %v949 = vpop.f32.mrb[0].mxu0
        %v950 = vpop.f32.mrb[0].mxu0
        %v951 = vadd.f32 %v638, %v950
        %v952 = vpop.f32.mrb[0].mxu0
        %953 = vmatprep.mubr.bf16.mxu0 0
        %954 = vmatmul.mubr.bf16.gmra.mrb[0].mxu0 %v834
        %v955 = vpop.f32.mrb[0].mxu0
        %v956 = vadd.f32 %v643, %v955
        %v957 = vpop.f32.mrb[0].mxu0
        %v958 = vpop.f32.mrb[0].mxu0
        %v959 = vadd.f32 %v646, %v958
        %v960 = vpop.f32.mrb[0].mxu0
        %961 = vmatprep.mubr.bf16.mxu0 0
        %962 = vmatmul.mubr.bf16.gmra.mrb[0].mxu0 %v837
        %v963 = vpop.f32.mrb[0].mxu0
        %v964 = vadd.f32 %v651, %v963
        %v965 = vpop.f32.mrb[0].mxu0
        %v966 = vpop.f32.mrb[0].mxu0
        %v967 = vadd.f32 %v654, %v966
        %v968 = vpop.f32.mrb[0].mxu0
        %969 = vmatprep.mubr.bf16.mxu0 0
        %970 = vmatmul.mubr.bf16.gmra.mrb[0].mxu0 %v840
        %v971 = vpop.f32.mrb[0].mxu0
        %v972 = vadd.f32 %v659, %v971
        %v973 = vpop.f32.mrb[0].mxu0
        %v974 = vpop.f32.mrb[0].mxu0
        %v975 = vadd.f32 %v662, %v974
        %v976 = vpop.f32.mrb[0].mxu0
        %977 = vmatprep.mubr.bf16.mxu0 0
        %978 = vmatmul.mubr.bf16.gmra.mrb[0].mxu0 %v843
        %v979 = vpop.f32.mrb[0].mxu0
        %v980 = vadd.f32 %v667, %v979
        %v981 = vpop.f32.mrb[0].mxu0
        %v982 = vpop.f32.mrb[0].mxu0
        %v983 = vadd.f32 %v670, %v982
        %v984 = vpop.f32.mrb[0].mxu0
        %985 = vmatprep.mubr.bf16.mxu0 0
        %986 = vmatmul.mubr.bf16.gmra.mrb[0].mxu0 %v846
        %v987 = vpop.f32.mrb[0].mxu0
        %v988 = vadd.f32 %v675, %v987
        %v989 = vpop.f32.mrb[0].mxu0
        %v990 = vpop.f32.mrb[0].mxu0
        %v991 = vadd.f32 %v678, %v990
        %v992 = vpop.f32.mrb[0].mxu0
        %993 = vmatprep.mubr.bf16.mxu0 0
        %994 = vmatmul.mubr.bf16.gmra.mrb[0].mxu0 %v849
        %v995 = vpop.f32.mrb[0].mxu0
        %v996 = vadd.f32 %v683, %v995
        %v997 = vpop.f32.mrb[0].mxu0
        %v998 = vpop.f32.mrb[0].mxu0
        %v999 = vadd.f32 %v686, %v998
        %v1000 = vpop.f32.mrb[0].mxu0
        %1001 = vmatprep.mubr.bf16.mxu0 0
        %1002 = vmatmul.mubr.bf16.gmra.mrb[0].mxu0 %v852
        %v1003 = vpop.f32.mrb[0].mxu0
        %v1004 = vadd.f32 %v691, %v1003
        %v1005 = vpop.f32.mrb[0].mxu0
        %v1006 = vpop.f32.mrb[0].mxu0
        %v1007 = vadd.f32 %v694, %v1006
        %v1008 = vpop.f32.mrb[0].mxu0
        %1009 = vmatprep.mubr.bf16.mxu0 0
        %1010 = vmatmul.mubr.bf16.gmra.mrb[0].mxu0 %v855
        %v1011 = vpop.f32.mrb[0].mxu0
        %v1012 = vadd.f32 %v699, %v1011
        %v1013 = vpop.f32.mrb[0].mxu0
        %v1014 = vpop.f32.mrb[0].mxu0
        %v1015 = vadd.f32 %v702, %v1014
        %v1016 = vpop.f32.mrb[0].mxu0
        %1017 = vdwg.mxu0
        %v1018 = vld [vmem:[%s308] sm:$0x1]
        %v1020 = vlaneseq
        %v1021 = vshrl.u32 %v1020, 7
        %v1022 = vsub.s32 0, %v1021
        %v1023 = vrot.slane %v1018, %v1022
        %v1025 = vadd.f32 %v892, %v1023
        %v1026 = vadd.f32 %v895, %v1023
        %v1027 = vadd.f32 %v900, %v1023
        %v1028 = vadd.f32 %v903, %v1023
        %v1029 = vadd.f32 %v908, %v1023
        %v1030 = vadd.f32 %v911, %v1023
        %v1031 = vadd.f32 %v916, %v1023
        %v1032 = vadd.f32 %v919, %v1023
        %v1033 = vadd.f32 %v924, %v1023
        %v1034 = vadd.f32 %v927, %v1023
        %v1035 = vadd.f32 %v932, %v1023
        %v1036 = vadd.f32 %v935, %v1023
        %v1037 = vadd.f32 %v940, %v1023
        %v1038 = vadd.f32 %v943, %v1023
        %v1039 = vadd.f32 %v948, %v1023
        %v1040 = vadd.f32 %v951, %v1023
        %v1041 = vadd.f32 %v956, %v1023
        %v1042 = vadd.f32 %v959, %v1023
        %v1043 = vadd.f32 %v964, %v1023
        %v1044 = vadd.f32 %v967, %v1023
        %v1045 = vadd.f32 %v972, %v1023
        %v1046 = vadd.f32 %v975, %v1023
        %v1047 = vadd.f32 %v980, %v1023
        %v1048 = vadd.f32 %v983, %v1023
        %v1049 = vadd.f32 %v988, %v1023
        %v1050 = vadd.f32 %v991, %v1023
        %v1051 = vadd.f32 %v996, %v1023
        %v1052 = vadd.f32 %v999, %v1023
        %v1053 = vadd.f32 %v1004, %v1023
        %v1054 = vadd.f32 %v1007, %v1023
        %v1055 = vadd.f32 %v1012, %v1023
        %v1056 = vadd.f32 %v1015, %v1023
        %v1057 = vmax.f32 %v1025, 0.0
        %v1058 = vmax.f32 %v1026, 0.0
        %v1059 = vmax.f32 %v1027, 0.0
        %v1060 = vmax.f32 %v1028, 0.0
        %v1061 = vmax.f32 %v1029, 0.0
        %v1062 = vmax.f32 %v1030, 0.0
        %v1063 = vmax.f32 %v1031, 0.0
        %v1064 = vmax.f32 %v1032, 0.0
        %v1065 = vmax.f32 %v1033, 0.0
        %v1066 = vmax.f32 %v1034, 0.0
        %v1067 = vmax.f32 %v1035, 0.0
        %v1068 = vmax.f32 %v1036, 0.0
        %v1069 = vmax.f32 %v1037, 0.0
        %v1070 = vmax.f32 %v1038, 0.0
        %v1071 = vmax.f32 %v1039, 0.0
        %v1072 = vmax.f32 %v1040, 0.0
        %v1073 = vmax.f32 %v1041, 0.0
        %v1074 = vmax.f32 %v1042, 0.0
        %v1075 = vmax.f32 %v1043, 0.0
        %v1076 = vmax.f32 %v1044, 0.0
        %v1077 = vmax.f32 %v1045, 0.0
        %v1078 = vmax.f32 %v1046, 0.0
        %v1079 = vmax.f32 %v1047, 0.0
        %v1080 = vmax.f32 %v1048, 0.0
        %v1081 = vmax.f32 %v1049, 0.0
        %v1082 = vmax.f32 %v1050, 0.0
        %v1083 = vmax.f32 %v1051, 0.0
        %v1084 = vmax.f32 %v1052, 0.0
        %v1085 = vmax.f32 %v1053, 0.0
        %v1086 = vmax.f32 %v1054, 0.0
        %v1087 = vmax.f32 %v1055, 0.0
        %v1088 = vmax.f32 %v1056, 0.0
        %1089 = vst [vmem:[%s285] sm:$0xff] %v1057
        %1090 = vst [vmem:[%s285 + $0x8] sm:$0xff] %v1058
        %1091 = vst [vmem:[%s285 + $0x10] sm:$0xff] %v1059
        %1092 = vst [vmem:[%s285 + $0x18] sm:$0xff] %v1060
        %1093 = vst [vmem:[%s285 + $0x20] sm:$0xff] %v1061
        %1094 = vst [vmem:[%s285 + $0x28] sm:$0xff] %v1062
        %1095 = vst [vmem:[%s285 + $0x30] sm:$0xff] %v1063
        %1096 = vst [vmem:[%s285 + $0x38] sm:$0xff] %v1064
        %1097 = vst [vmem:[%s285 + $0x40] sm:$0xff] %v1065
        %1098 = vst [vmem:[%s285 + $0x48] sm:$0xff] %v1066
        %1099 = vst [vmem:[%s285 + $0x50] sm:$0xff] %v1067
        %1100 = vst [vmem:[%s285 + $0x58] sm:$0xff] %v1068
        %1101 = vst [vmem:[%s285 + $0x60] sm:$0xff] %v1069
        %1102 = vst [vmem:[%s285 + $0x68] sm:$0xff] %v1070
        %1103 = vst [vmem:[%s285 + $0x70] sm:$0xff] %v1071
        %1104 = vst [vmem:[%s285 + $0x78] sm:$0xff] %v1072
        %1105 = vst [vmem:[%s285 + $0x80] sm:$0xff] %v1073
        %1106 = vst [vmem:[%s285 + $0x88] sm:$0xff] %v1074
        %1107 = vst [vmem:[%s285 + $0x90] sm:$0xff] %v1075
        %1108 = vst [vmem:[%s285 + $0x98] sm:$0xff] %v1076
        %1109 = vst [vmem:[%s285 + $0xa0] sm:$0xff] %v1077
        %1110 = vst [vmem:[%s285 + $0xa8] sm:$0xff] %v1078
        %1111 = vst [vmem:[%s285 + $0xb0] sm:$0xff] %v1079
        %1112 = vst [vmem:[%s285 + $0xb8] sm:$0xff] %v1080
        %1113 = vst [vmem:[%s285 + $0xc0] sm:$0xff] %v1081
        %1114 = vst [vmem:[%s285 + $0xc8] sm:$0xff] %v1082
        %1115 = vst [vmem:[%s285 + $0xd0] sm:$0xff] %v1083
        %1116 = vst [vmem:[%s285 + $0xd8] sm:$0xff] %v1084
        %1117 = vst [vmem:[%s285 + $0xe0] sm:$0xff] %v1085
        %1118 = vst [vmem:[%s285 + $0xe8] sm:$0xff] %v1086
        %1119 = vst [vmem:[%s285 + $0xf0] sm:$0xff] %v1087
        %1120 = vst [vmem:[%s285 + $0xf8] sm:$0xff] %v1088
        %s1121 = sand.u32 %s171, 1
        %s1122 = scalar_lea.sflag [#allocation3], %s1121
        %s1123 = sand.u32 %s171, 1
        %s1124 = smul.addr %s1123, 256
        %s1125 = scalar_lea.vmem [#allocation2], %s1124
        // Predicated region
        $region41: #{tpu_custom_call.1} parent=39 // pred_check
          %p1126 = pneg %p181
        $region42: #{tpu_custom_call.1} parent=39 // pred_check_branch
          %1128 = sbr.rel (%p1126) target = $region44
        $region43: #{tpu_custom_call.1} parent=39 // pred_region
          %s1129 = smul.u32 32, %s23
          %s1131 = ssub.s32 4096, 4096
          %1132 = vsyncadd %s1122, %s1131
          %s1133 = sadd.s32 %s24, %s1129
          %s1134 = smul.addr %s1133, 128
          %s1135 = scalar_lea.hbm %s5, %s1134
          %s1136 = sshll.u32 %s1125, 4
          %s1137 = int_to_ptr.vmem [resolvable:$true] %s1136
          %1142 = dma.vmem_to_hbm [thread:$0]  %s1137, 4096, %s1135, %s1122, 128, 128, 8
        $region44: #{tpu_custom_call.1} parent=39 // pred_fallthru
          _
      $region40: #{tpu_custom_call.1} parent=5 // pred_fallthru
        _
      %p1143 = scmp.le.s32.totalorder 2, %s14
      // Predicated region
      $region45: #{tpu_custom_call.1} parent=5 // pred_check
        %p1144 = pneg %p1143
      $region46: #{tpu_custom_call.1} parent=5 // pred_check_branch
        %1146 = sbr.rel (%p1144) target = $region48
      $region47: #{tpu_custom_call.1} parent=5 // pred_region
        %s1147 = ssub.s32 %s14, 2
        // Predicated region
        $region49: #{tpu_custom_call.1} parent=47 // pred_check
          %p1148 = pneg %p187
        $region50: #{tpu_custom_call.1} parent=47 // pred_check_branch
          %1150 = sbr.rel (%p1148) target = $region52
        $region51: #{tpu_custom_call.1} parent=47 // pred_region
          %s1151 = sand.u32 %s172, 1
          %s1152 = scalar_lea.sflag [#allocation3], %s1151
          %s1153 = sand.u32 %s172, 1
          %s1154 = smul.addr %s1153, 256
          %s1155 = scalar_lea.vmem [#allocation2], %s1154
          %1156 = dma.done %s1152, 4096
        $region52: #{tpu_custom_call.1} parent=47 // pred_fallthru
          _
      $region48: #{tpu_custom_call.1} parent=5 // pred_fallthru
        _
    $region6: #{tpu_custom_call.1} parent=1 // loop_footer
      %s18 = sadd.s32 1, %s14
    $region7: #{tpu_custom_call.1} parent=1 // loop_footer_branch
      %13 = sbr.rel target = $region3
    $region8: #{tpu_custom_call.1} parent=1 // loop_exit
      _
    %1157 = vsyncpa [#allocation3], 1
    %s1158 = scalar_lea.sflag [#allocation3], 1
    %1159 = vsyncpa %s1158, 1

// kernel: tpu_custom_call.1
$region0: #{tpu_custom_call.1}
  #allocation0 [shape = 'u32[]', space=smem, size = 0x4, offset = 0x4, fixed_abs, tag = 'smem constant byte address 0x4 - core index']
  #allocation1 [shape = 'u32[144,128]{1,0:T(1,128)}', space=vmem, size = 0x12000, scoped, tag = 'internal scratch']
  %s0 = inlined_call_operand.vmem [shape: bf16[512,64], index: 0, kind: input, shape index: {}]
  %s1 = inlined_call_operand.vmem [shape: bf16[512,64], index: 1, kind: input, shape index: {}]
  %s2 = inlined_call_operand.vmem [shape: bf16[64,128], index: 2, kind: input, shape index: {}]
  %s3 = inlined_call_operand.vmem [shape: bf16[64,128], index: 3, kind: input, shape index: {}]
  %s4 = inlined_call_operand.vmem [shape: f32[1,128], index: 4, kind: input, shape index: {}]
  %s5 = inlined_call_operand.hbm [shape: f32[512,128], index: 5, kind: output, shape index: {}]
  %s6 = sld [smem:[#allocation0]]
  $region53: #{tpu_custom_call.1} parent=0
    _
  %s8 = ssub.s32 1, %s6
  %s9 = scalar_select 0, %s8, %s6
  $region1: #{tpu_custom_call.1} parent=0
    #allocation2 [shape = 'u8[262144]{0}', space=vmem, size = 0x40000, scoped, tag = 'output window, operand 0']
    #allocation3 [shape = 's32[2]{0}', space=sflag, size = 0x8, scoped, tag = 'scoped memory for tpu_custom_call.1']
    %10 = vsyncpa [#allocation3], 0
    %s11 = scalar_lea.sflag [#allocation3], 1
    %12 = vsyncpa %s11, 0
    loop: start=0, step=1, limit=4
    $region2: #{tpu_custom_call.1} parent=1 // loop_pre_header
      _
    $region3: #{tpu_custom_call.1} parent=1 // loop_header
      %s14 = sphi 0, %s18
      %p15 = scmp.ge.s32.totalorder %s14, 4
      %s21 = sphi 0, %s33
      %s22 = sphi 0, %s29
      %s23 = sphi 0, %s21
      %s24 = sphi 0, %s22
      %s25 = sphi 0, %s23
      %s26 = sphi 0, %s24
      %s36 = sphi 0, %s38
      %s39 = sphi 0, %s36
      %s40 = sphi 0, %s39
      %s56 = sphi 0, %s40
      %s62 = sphi 0, %s64
      %s65 = sphi 0, %s62
      %s66 = sphi 0, %s65
      %s82 = sphi 0, %s66
      %s88 = sphi 0, %s90
      %s91 = sphi 0, %s88
      %s92 = sphi 0, %s91
      %s108 = sphi 0, %s92
      %s114 = sphi 0, %s116
      %s117 = sphi 0, %s114
      %s118 = sphi 0, %s117
      %s134 = sphi 0, %s118
      %s140 = sphi 0, %s142
      %s143 = sphi 0, %s140
      %s144 = sphi 0, %s143
      %s160 = sphi 0, %s144
      %s168 = sphi 0, %s170
      %s171 = sphi 0, %s168
      %s172 = sphi 0, %s171
      %s188 = sphi 0, %s172
    $region4: #{tpu_custom_call.1} parent=1 // loop_header_branch
      %17 = sbr.rel (%p15) target = $region8
    $region5: #{tpu_custom_call.1} parent=1 // loop_body
      %s19 = ssub.s32 %s14, 1
      %s20 = ssub.s32 %s14, 2
      %s27 = sadd.s32 1, %s22
      %p28 = scmp.ge.s32.totalorder %s27, 1
      %s29 = scalar_select %p28, 0, %s27
      %s30 = sadd.s32 1, %s21
      %s31 = scalar_select %p28, %s30, %s21
      %p32 = scmp.ge.s32.totalorder %s31, 2
      %s33 = scalar_select %p32, 0, %s31
      %s34 = ssub.s32 %s21, %s33
      %p35 = scmp.eq.s32.totalorder %s34, 0
      %s37 = sadd.s32 %s36, 1
      %s38 = scalar_select %p35, %s36, %s37
      %p41 = pneg %p35
      %p42 = scmp.eq.s32.totalorder %s14, 1
      %p43 = por %p41, %p42
      %p44 = scmp.ne.s32.totalorder %s36, %s39
      %p45 = scmp.eq.s32.totalorder %s14, 0
      %p46 = por %p44, %p45
      %p47 = scmp.ne.s32.totalorder %s36, %s39
      %p48 = scmp.eq.s32.totalorder %s19, 1
      %p49 = por %p47, %p48
      %p50 = scmp.ne.s32.totalorder %s39, %s40
      %p51 = scmp.eq.s32.totalorder %s19, 0
      %p52 = por %p50, %p51
      %p53 = scmp.ne.s32.totalorder %s39, %s40
      %p54 = scmp.eq.s32.totalorder %s20, 1
      %p55 = por %p53, %p54
      %p57 = scmp.ne.s32.totalorder %s40, %s56
      %p58 = scmp.eq.s32.totalorder %s20, 0
      %p59 = por %p57, %p58
      %s60 = ssub.s32 %s21, %s33
      %p61 = scmp.eq.s32.totalorder %s60, 0
      %s63 = sadd.s32 %s62, 1
      %s64 = scalar_select %p61, %s62, %s63
      %p67 = pneg %p61
      %p68 = scmp.eq.s32.totalorder %s14, 1
      %p69 = por %p67, %p68
      %p70 = scmp.ne.s32.totalorder %s62, %s65
      %p71 = scmp.eq.s32.totalorder %s14, 0
      %p72 = por %p70, %p71
      %p73 = scmp.ne.s32.totalorder %s62, %s65
      %p74 = scmp.eq.s32.totalorder %s19, 1
      %p75 = por %p73, %p74
      %p76 = scmp.ne.s32.totalorder %s65, %s66
      %p77 = scmp.eq.s32.totalorder %s19, 0
      %p78 = por %p76, %p77
      %p79 = scmp.ne.s32.totalorder %s65, %s66
      %p80 = scmp.eq.s32.totalorder %s20, 1
      %p81 = por %p79, %p80
      %p83 = scmp.ne.s32.totalorder %s66, %s82
      %p84 = scmp.eq.s32.totalorder %s20, 0
      %p85 = por %p83, %p84
      %s86 = ssub.s32 %s22, %s29
      %p87 = scmp.eq.s32.totalorder %s86, 0
      %s89 = sadd.s32 %s88, 1
      %s90 = scalar_select %p87, %s88, %s89
      %p93 = pneg %p87
      %p94 = scmp.eq.s32.totalorder %s14, 1
      %p95 = por %p93, %p94
      %p96 = scmp.ne.s32.totalorder %s88, %s91
      %p97 = scmp.eq.s32.totalorder %s14, 0
      %p98 = por %p96, %p97
      %p99 = scmp.ne.s32.totalorder %s88, %s91
      %p100 = scmp.eq.s32.totalorder %s19, 1
      %p101 = por %p99, %p100
      %p102 = scmp.ne.s32.totalorder %s91, %s92
      %p103 = scmp.eq.s32.totalorder %s19, 0
      %p104 = por %p102, %p103
      %p105 = scmp.ne.s32.totalorder %s91, %s92
      %p106 = scmp.eq.s32.totalorder %s20, 1
      %p107 = por %p105, %p106
      %p109 = scmp.ne.s32.totalorder %s92, %s108
      %p110 = scmp.eq.s32.totalorder %s20, 0
      %p111 = por %p109, %p110
      %s112 = ssub.s32 %s22, %s29
      %p113 = scmp.eq.s32.totalorder %s112, 0
      %s115 = sadd.s32 %s114, 1
      %s116 = scalar_select %p113, %s114, %s115
      %p119 = pneg %p113
      %p120 = scmp.eq.s32.totalorder %s14, 1
      %p121 = por %p119, %p120
      %p122 = scmp.ne.s32.totalorder %s114, %s117
      %p123 = scmp.eq.s32.totalorder %s14, 0
      %p124 = por %p122, %p123
      %p125 = scmp.ne.s32.totalorder %s114, %s117
      %p126 = scmp.eq.s32.totalorder %s19, 1
      %p127 = por %p125, %p126
      %p128 = scmp.ne.s32.totalorder %s117, %s118
      %p129 = scmp.eq.s32.totalorder %s19, 0
      %p130 = por %p128, %p129
      %p131 = scmp.ne.s32.totalorder %s117, %s118
      %p132 = scmp.eq.s32.totalorder %s20, 1
      %p133 = por %p131, %p132
      %p135 = scmp.ne.s32.totalorder %s118, %s134
      %p136 = scmp.eq.s32.totalorder %s20, 0
      %p137 = por %p135, %p136
      %s138 = ssub.s32 %s22, %s29
      %p139 = scmp.eq.s32.totalorder %s138, 0
      %s141 = sadd.s32 %s140, 1
      %s142 = scalar_select %p139, %s140, %s141
      %p145 = pneg %p139
      %p146 = scmp.eq.s32.totalorder %s14, 1
      %p147 = por %p145, %p146
      %p148 = scmp.ne.s32.totalorder %s140, %s143
      %p149 = scmp.eq.s32.totalorder %s14, 0
      %p150 = por %p148, %p149
      %p151 = scmp.ne.s32.totalorder %s140, %s143
      %p152 = scmp.eq.s32.totalorder %s19, 1
      %p153 = por %p151, %p152
      %p154 = scmp.ne.s32.totalorder %s143, %s144
      %p155 = scmp.eq.s32.totalorder %s19, 0
      %p156 = por %p154, %p155
      %p157 = scmp.ne.s32.totalorder %s143, %s144
      %p158 = scmp.eq.s32.totalorder %s20, 1
      %p159 = por %p157, %p158
      %p161 = scmp.ne.s32.totalorder %s144, %s160
      %p162 = scmp.eq.s32.totalorder %s20, 0
      %p163 = por %p161, %p162
      %s164 = ssub.s32 %s21, %s33
      %s165 = ssub.s32 %s22, %s29
      %s166 = sor.u32 %s164, %s165
      %p167 = scmp.eq.s32.totalorder %s166, 0
      %s169 = sadd.s32 %s168, 1
      %s170 = scalar_select %p167, %s168, %s169
      %p173 = pneg %p167
      %p174 = scmp.eq.s32.totalorder %s14, 1
      %p175 = por %p173, %p174
      %p176 = scmp.ne.s32.totalorder %s168, %s171
      %p177 = scmp.eq.s32.totalorder %s14, 0
      %p178 = por %p176, %p177
      %p179 = scmp.ne.s32.totalorder %s168, %s171
      %p180 = scmp.eq.s32.totalorder %s19, 1
      %p181 = por %p179, %p180
      %p182 = scmp.ne.s32.totalorder %s171, %s172
      %p183 = scmp.eq.s32.totalorder %s19, 0
      %p184 = por %p182, %p183
      %p185 = scmp.ne.s32.totalorder %s171, %s172
      %p186 = scmp.eq.s32.totalorder %s20, 1
      %p187 = por %p185, %p186
      %p189 = scmp.ne.s32.totalorder %s172, %s188
      %p190 = scmp.eq.s32.totalorder %s20, 0
      %p191 = por %p189, %p190
      %p192 = scmp.le.s32.totalorder 1, %s14
      %p193 = scmp.lt.s32.totalorder %s14, 3
      %p194 = pnand %p192, %p193
      %p195 = pneg %p194
      // Predicated region
      $region9: #{tpu_custom_call.1} parent=5 // pred_check
        _
      $region10: #{tpu_custom_call.1} parent=5 // pred_check_branch
        %197 = sbr.rel (%p194) target = $region12
      $region11: #{tpu_custom_call.1} parent=5 // pred_region
        %s198 = ssub.s32 %s14, 1
        // Predicated region
        $region13: #{tpu_custom_call.1} parent=11 // pred_check
          %p199 = pneg %p104
        $region14: #{tpu_custom_call.1} parent=11 // pred_check_branch
          %201 = sbr.rel (%p199) target = $region16
        $region15: #{tpu_custom_call.1} parent=11 // pred_region
          %p202 = scmp.lt.s32.totalorder %s24, 0
          %s203 = scalar_select %p202, %s24, 0
          %s204 = smul.addr %s203, 4
          %s205 = scalar_lea.vmem %s2, %s204
        $region16: #{tpu_custom_call.1} parent=11 // pred_fallthru
          _
        // Predicated region
        $region17: #{tpu_custom_call.1} parent=11 // pred_check
          %p206 = pneg %p130
        $region18: #{tpu_custom_call.1} parent=11 // pred_check_branch
          %208 = sbr.rel (%p206) target = $region20
        $region19: #{tpu_custom_call.1} parent=11 // pred_region
          %p209 = scmp.lt.s32.totalorder %s24, 0
          %s210 = scalar_select %p209, %s24, 0
          %s211 = smul.addr %s210, 4
          %s212 = scalar_lea.vmem %s3, %s211
        $region20: #{tpu_custom_call.1} parent=11 // pred_fallthru
          _
        // Predicated region
        $region21: #{tpu_custom_call.1} parent=11 // pred_check
          %p213 = pneg %p156
        $region22: #{tpu_custom_call.1} parent=11 // pred_check_branch
          %215 = sbr.rel (%p213) target = $region24
        $region23: #{tpu_custom_call.1} parent=11 // pred_region
          %p216 = scmp.lt.s32.totalorder %s24, 0
          %s217 = scalar_select %p216, %s24, 0
          %s218 = scalar_lea.vmem %s4, %s217
        $region24: #{tpu_custom_call.1} parent=11 // pred_fallthru
          _
      $region12: #{tpu_custom_call.1} parent=5 // pred_fallthru
        _
      %p219 = scmp.lt.s32.totalorder %s14, 2
      // Predicated region
      $region25: #{tpu_custom_call.1} parent=5 // pred_check
        %p220 = pneg %p219
      $region26: #{tpu_custom_call.1} parent=5 // pred_check_branch
        %222 = sbr.rel (%p220) target = $region28
      $region27: #{tpu_custom_call.1} parent=5 // pred_region
        // Predicated region
        $region29: #{tpu_custom_call.1} parent=27 // pred_check
          %p223 = pneg %p46
        $region30: #{tpu_custom_call.1} parent=27 // pred_check_branch
          %225 = sbr.rel (%p223) target = $region32
        $region31: #{tpu_custom_call.1} parent=27 // pred_region
          %s226 = smul.u32 32, %s21
          %p227 = scmp.lt.s32.totalorder %s226, 63
          %s228 = scalar_select %p227, %s226, 63
          %s229 = smul.addr %s228, 4
          %s230 = scalar_lea.vmem %s0, %s229
          %s231 = smul.u32 32, %s21
        $region32: #{tpu_custom_call.1} parent=27 // pred_fallthru
          _
        // Predicated region
        $region33: #{tpu_custom_call.1} parent=27 // pred_check
          %p232 = pneg %p72
        $region34: #{tpu_custom_call.1} parent=27 // pred_check_branch
          %234 = sbr.rel (%p232) target = $region36
        $region35: #{tpu_custom_call.1} parent=27 // pred_region
          %s235 = smul.u32 32, %s21
          %p236 = scmp.lt.s32.totalorder %s235, 63
          %s237 = scalar_select %p236, %s235, 63
          %s238 = smul.addr %s237, 4
          %s239 = scalar_lea.vmem %s1, %s238
          %s240 = smul.u32 32, %s21
        $region36: #{tpu_custom_call.1} parent=27 // pred_fallthru
          _
      $region28: #{tpu_custom_call.1} parent=5 // pred_fallthru
        _
      %p241 = scmp.le.s32.totalorder 1, %s14
      %p242 = scmp.lt.s32.totalorder %s14, 3
      %p243 = pnand %p241, %p242
      %p244 = pneg %p243
      // Predicated region
      $region37: #{tpu_custom_call.1} parent=5 // pred_check
        _
      $region38: #{tpu_custom_call.1} parent=5 // pred_check_branch
        %246 = sbr.rel (%p243) target = $region40
      $region39: #{tpu_custom_call.1} parent=5 // pred_region
        %s247 = ssub.s32 %s14, 1
        %s248 = smul.u32 32, %s23
        %p249 = scmp.lt.s32.totalorder %s248, 63
        %s250 = scalar_select %p249, %s248, 63
        %s251 = smul.addr %s250, 4
        %s252 = scalar_lea.vmem %s0, %s251
        %p253 = pneg %p52
        %p254 = pneg %p49
        %s255 = smul.u32 32, %s23
        %p256 = scmp.lt.s32.totalorder %s255, 63
        %s257 = scalar_select %p256, %s255, 63
        %s258 = smul.addr %s257, 4
        %s259 = scalar_lea.vmem %s1, %s258
        %p260 = pneg %p78
        %p261 = pneg %p75
        %p262 = scmp.lt.s32.totalorder %s24, 0
        %s263 = scalar_select %p262, %s24, 0
        %s264 = smul.addr %s263, 4
        %s265 = scalar_lea.vmem %s2, %s264
        %p266 = pneg %p104
        %p267 = pneg %p101
        %p268 = scmp.lt.s32.totalorder %s24, 0
        %s269 = scalar_select %p268, %s24, 0
        %s270 = smul.addr %s269, 4
        %s271 = scalar_lea.vmem %s3, %s270
        %p272 = pneg %p130
        %p273 = pneg %p127
        %p274 = scmp.lt.s32.totalorder %s24, 0
        %s275 = scalar_select %p274, %s24, 0
        %s276 = scalar_lea.vmem %s4, %s275
        %p277 = pneg %p156
        %p278 = pneg %p153
        %p279 = pneg %p184
        %p280 = pneg %p181
        %s281 = sand.u32 %s171, 1
        %s282 = scalar_lea.sflag [#allocation3], %s281
        %s283 = sand.u32 %s171, 1
        %s284 = smul.addr %s283, 256
        %s285 = scalar_lea.vmem [#allocation2], %s284
        %s286 = smul.u32 32, %s23
        %p287 = scmp.lt.s32.totalorder %s286, 63
        %s288 = scalar_select %p287, %s286, 63
        %s289 = smul.addr %s288, 4
        %s290 = scalar_lea.vmem %s0, %s289
        %s291 = smul.u32 32, %s23
        %s292 = smul.u32 32, %s23
        %p293 = scmp.lt.s32.totalorder %s292, 63
        %s294 = scalar_select %p293, %s292, 63
        %s295 = smul.addr %s294, 4
        %s296 = scalar_lea.vmem %s1, %s295
        %s297 = smul.u32 32, %s23
        %p298 = scmp.lt.s32.totalorder %s24, 0
        %s299 = scalar_select %p298, %s24, 0
        %s300 = smul.addr %s299, 4
        %s301 = scalar_lea.vmem %s2, %s300
        %p302 = scmp.lt.s32.totalorder %s24, 0
        %s303 = scalar_select %p302, %s24, 0
        %s304 = smul.addr %s303, 4
        %s305 = scalar_lea.vmem %s3, %s304
        %p306 = scmp.lt.s32.totalorder %s24, 0
        %s307 = scalar_select %p306, %s24, 0
        %s308 = scalar_lea.vmem %s4, %s307
        %s309 = smul.u32 32, %s23
        %v311 = vld [vmem:[%s290] sm:$0xf]
        %v312 = vld [vmem:[%s290 + $0x4] sm:$0xf]
        %v313 = vld [vmem:[%s290 + $0x8] sm:$0xf]
        %v314 = vld [vmem:[%s290 + $0xc] sm:$0xf]
        %v315 = vld [vmem:[%s290 + $0x10] sm:$0xf]
        %v316 = vld [vmem:[%s290 + $0x14] sm:$0xf]
        %v317 = vld [vmem:[%s290 + $0x18] sm:$0xf]
        %v318 = vld [vmem:[%s290 + $0x1c] sm:$0xf]
        %v319 = vld [vmem:[%s290 + $0x20] sm:$0xf]
        %v320 = vld [vmem:[%s290 + $0x24] sm:$0xf]
        %v321 = vld [vmem:[%s290 + $0x28] sm:$0xf]
        %v322 = vld [vmem:[%s290 + $0x2c] sm:$0xf]
        %v323 = vld [vmem:[%s290 + $0x30] sm:$0xf]
        %v324 = vld [vmem:[%s290 + $0x34] sm:$0xf]
        %v325 = vld [vmem:[%s290 + $0x38] sm:$0xf]
        %v326 = vld [vmem:[%s290 + $0x3c] sm:$0xf]
        %v327 = vld [vmem:[%s290 + $0x40] sm:$0xf]
        %v328 = vld [vmem:[%s290 + $0x44] sm:$0xf]
        %v329 = vld [vmem:[%s290 + $0x48] sm:$0xf]
        %v330 = vld [vmem:[%s290 + $0x4c] sm:$0xf]
        %v331 = vld [vmem:[%s290 + $0x50] sm:$0xf]
        %v332 = vld [vmem:[%s290 + $0x54] sm:$0xf]
        %v333 = vld [vmem:[%s290 + $0x58] sm:$0xf]
        %v334 = vld [vmem:[%s290 + $0x5c] sm:$0xf]
        %v335 = vld [vmem:[%s290 + $0x60] sm:$0xf]
        %v336 = vld [vmem:[%s290 + $0x64] sm:$0xf]
        %v337 = vld [vmem:[%s290 + $0x68] sm:$0xf]
        %v338 = vld [vmem:[%s290 + $0x6c] sm:$0xf]
        %v339 = vld [vmem:[%s290 + $0x70] sm:$0xf]
        %v340 = vld [vmem:[%s290 + $0x74] sm:$0xf]
        %v341 = vld [vmem:[%s290 + $0x78] sm:$0xf]
        %v342 = vld [vmem:[%s290 + $0x7c] sm:$0xf]
        %v343 = vld [vmem:[%s301] sm:$0xf]
        %v344 = vld [vmem:[%s301 + $0x4] sm:$0xf]
        %v345 = vld [vmem:[%s301 + $0x8] sm:$0xf]
        %v346 = vld [vmem:[%s301 + $0xc] sm:$0xf]
        %v347 = vld [vmem:[%s301 + $0x10] sm:$0xf]
        %v348 = vld [vmem:[%s301 + $0x14] sm:$0xf]
        %v349 = vld [vmem:[%s301 + $0x18] sm:$0xf]
        %v350 = vld [vmem:[%s301 + $0x1c] sm:$0xf]
        %v351 = vld [vmem:[%s296] sm:$0xf]
        %v352 = vld [vmem:[%s296 + $0x4] sm:$0xf]
        %v353 = vld [vmem:[%s296 + $0x8] sm:$0xf]
        %v354 = vld [vmem:[%s296 + $0xc] sm:$0xf]
        %v355 = vld [vmem:[%s296 + $0x10] sm:$0xf]
        %v356 = vld [vmem:[%s296 + $0x14] sm:$0xf]
        %v357 = vld [vmem:[%s296 + $0x18] sm:$0xf]
        %v358 = vld [vmem:[%s296 + $0x1c] sm:$0xf]
        %v359 = vld [vmem:[%s296 + $0x20] sm:$0xf]
        %v360 = vld [vmem:[%s296 + $0x24] sm:$0xf]
        %v361 = vld [vmem:[%s296 + $0x28] sm:$0xf]
        %v362 = vld [vmem:[%s296 + $0x2c] sm:$0xf]
        %v363 = vld [vmem:[%s296 + $0x30] sm:$0xf]
        %v364 = vld [vmem:[%s296 + $0x34] sm:$0xf]
        %v365 = vld [vmem:[%s296 + $0x38] sm:$0xf]
        %v366 = vld [vmem:[%s296 + $0x3c] sm:$0xf]
        %v367 = vld [vmem:[%s296 + $0x40] sm:$0xf]
        %v368 = vld [vmem:[%s296 + $0x44] sm:$0xf]
        %v369 = vld [vmem:[%s296 + $0x48] sm:$0xf]
        %v370 = vld [vmem:[%s296 + $0x4c] sm:$0xf]
        %v371 = vld [vmem:[%s296 + $0x50] sm:$0xf]
        %v372 = vld [vmem:[%s296 + $0x54] sm:$0xf]
        %v373 = vld [vmem:[%s296 + $0x58] sm:$0xf]
        %v374 = vld [vmem:[%s296 + $0x5c] sm:$0xf]
        %v375 = vld [vmem:[%s296 + $0x60] sm:$0xf]
        %v376 = vld [vmem:[%s296 + $0x64] sm:$0xf]
        %v377 = vld [vmem:[%s296 + $0x68] sm:$0xf]
        %v378 = vld [vmem:[%s296 + $0x6c] sm:$0xf]
        %v379 = vld [vmem:[%s296 + $0x70] sm:$0xf]
        %v380 = vld [vmem:[%s296 + $0x74] sm:$0xf]
        %v381 = vld [vmem:[%s296 + $0x78] sm:$0xf]
        %v382 = vld [vmem:[%s296 + $0x7c] sm:$0xf]
        %v383 = vld [vmem:[%s305] sm:$0xf]
        %v384 = vld [vmem:[%s305 + $0x4] sm:$0xf]
        %v385 = vld [vmem:[%s305 + $0x8] sm:$0xf]
        %v386 = vld [vmem:[%s305 + $0xc] sm:$0xf]
        %v387 = vld [vmem:[%s305 + $0x10] sm:$0xf]
        %v388 = vld [vmem:[%s305 + $0x14] sm:$0xf]
        %v389 = vld [vmem:[%s305 + $0x18] sm:$0xf]
        %v390 = vld [vmem:[%s305 + $0x1c] sm:$0xf]
        %v423 = vunpack.c.l.b16 %v351
        %v424 = vunpack.c.l.b16 %v352
        %v425 = vunpack.c.l.b16 %v353
        %v426 = vunpack.c.l.b16 %v354
        %v427 = vunpack.c.l.b16 %v355
        %v428 = vunpack.c.l.b16 %v356
        %v429 = vunpack.c.l.b16 %v357
        %v430 = vunpack.c.l.b16 %v358
        %v431 = vunpack.c.l.b16 %v359
        %v432 = vunpack.c.l.b16 %v360
        %v433 = vunpack.c.l.b16 %v361
        %v434 = vunpack.c.l.b16 %v362
        %v435 = vunpack.c.l.b16 %v363
        %v436 = vunpack.c.l.b16 %v364
        %v437 = vunpack.c.l.b16 %v365
        %v438 = vunpack.c.l.b16 %v366
        %v439 = vunpack.c.l.b16 %v367
        %v440 = vunpack.c.l.b16 %v368
        %v441 = vunpack.c.l.b16 %v369
        %v442 = vunpack.c.l.b16 %v370
        %v443 = vunpack.c.l.b16 %v371
        %v444 = vunpack.c.l.b16 %v372
        %v445 = vunpack.c.l.b16 %v373
        %v446 = vunpack.c.l.b16 %v374
        %v447 = vunpack.c.l.b16 %v375
        %v448 = vunpack.c.l.b16 %v376
        %v449 = vunpack.c.l.b16 %v377
        %v450 = vunpack.c.l.b16 %v378
        %v451 = vunpack.c.l.b16 %v379
        %v452 = vunpack.c.l.b16 %v380
        %v453 = vunpack.c.l.b16 %v381
        %v454 = vunpack.c.l.b16 %v382
        %v455 = vpack.c.b16 %v424, %v423
        %v456 = vpack.c.b16 %v426, %v425
        %v457 = vpack.c.b16 %v428, %v427
        %v458 = vpack.c.b16 %v430, %v429
        %v459 = vpack.c.b16 %v432, %v431
        %v460 = vpack.c.b16 %v434, %v433
        %v461 = vpack.c.b16 %v436, %v435
        %v462 = vpack.c.b16 %v438, %v437
        %v463 = vpack.c.b16 %v440, %v439
        %v464 = vpack.c.b16 %v442, %v441
        %v465 = vpack.c.b16 %v444, %v443
        %v466 = vpack.c.b16 %v446, %v445
        %v467 = vpack.c.b16 %v448, %v447
        %v468 = vpack.c.b16 %v450, %v449
        %v469 = vpack.c.b16 %v452, %v451
        %v470 = vpack.c.b16 %v454, %v453
        %v479 = vunpack.c.l.b16 %v383
        %v480 = vunpack.c.l.b16 %v384
        %v481 = vunpack.c.l.b16 %v385
        %v482 = vunpack.c.l.b16 %v386
        %v483 = vunpack.c.l.b16 %v387
        %v484 = vunpack.c.l.b16 %v388
        %v485 = vunpack.c.l.b16 %v389
        %v486 = vunpack.c.l.b16 %v390
        %v487 = vpack.c.b16 %v480, %v479
        %v488 = vpack.c.b16 %v482, %v481
        %v489 = vpack.c.b16 %v484, %v483
        %v490 = vpack.c.b16 %v486, %v485
        %vm495 = vcmask 523264
        %v497 = vsel %vm495, %v455, 0
        %v500 = vsel %vm495, %v456, 0
        %v503 = vsel %vm495, %v457, 0
        %v506 = vsel %vm495, %v458, 0
        %v509 = vsel %vm495, %v459, 0
        %v512 = vsel %vm495, %v460, 0
        %v515 = vsel %vm495, %v461, 0
        %v518 = vsel %vm495, %v462, 0
        %v521 = vsel %vm495, %v463, 0
        %v524 = vsel %vm495, %v464, 0
        %v527 = vsel %vm495, %v465, 0
        %v530 = vsel %vm495, %v466, 0
        %v533 = vsel %vm495, %v467, 0
        %v536 = vsel %vm495, %v468, 0
        %v539 = vsel %vm495, %v469, 0
        %v542 = vsel %vm495, %v470, 0
        %544 = vmatprep.subr.bf16.mxu0 0
        %545 = vmatpush1.bf16.msra.mxu0 %v487
        %546 = vmatprep.subr.bf16.mxu0 0
        %547 = vmatpush1.bf16.msra.mxu0 %v488
        %548 = vmatprep.subr.bf16.mxu0 0
        %549 = vmatpush1.bf16.msra.mxu0 %v489
        %550 = vmatprep.subr.bf16.mxu0 0
        %551 = vmatpush1.bf16.msra.mxu0 %v490
        %552 = vmatprep.subr.bf16.mxu0 0
        %553 = vmatpush1.bf16.msra.mxu0 0
        %554 = vmatprep.subr.bf16.mxu0 0
        %555 = vmatpush1.bf16.msra.mxu0 0
        %556 = vmatprep.subr.bf16.mxu0 0
        %557 = vmatpush1.bf16.msra.mxu0 0
        %558 = vmatprep.subr.bf16.mxu0 0
        %559 = vmatpush1.bf16.msra.mxu0 0
        %560 = vmatprep.subr.bf16.mxu0 0
        %561 = vmatpush1.bf16.msra.mxu0 0
        %562 = vmatprep.subr.bf16.mxu0 0
        %563 = vmatpush1.bf16.msra.mxu0 0
        %564 = vmatprep.subr.bf16.mxu0 0
        %565 = vmatpush1.bf16.msra.mxu0 0
        %566 = vmatprep.subr.bf16.mxu0 0
        %567 = vmatpush1.bf16.msra.mxu0 0
        %568 = vmatprep.subr.bf16.mxu0 0
        %569 = vmatpush1.bf16.msra.mxu0 0
        %570 = vmatprep.subr.bf16.mxu0 0
        %571 = vmatpush1.bf16.msra.mxu0 0
        %572 = vmatprep.subr.bf16.mxu0 0
        %573 = vmatpush1.bf16.msra.mxu0 0
        %574 = vmatprep.subr.bf16.mxu0 0
        %575 = vmatpush1.bf16.msra.mxu0 0
        %576 = vmatprep.mubr.bf16.mxu0 0
        %577 = vmatmul.mubr.bf16.gmra.mrb[0].mxu0 %v497
        %v578 = vpop.f32.mrb[0].mxu0
        %v579 = vadd.f32 0.0, %v578
        %v580 = vpop.f32.mrb[0].mxu0
        %v581 = vpop.f32.mrb[0].mxu0
        %v582 = vadd.f32 0.0, %v581
        %v583 = vpop.f32.mrb[0].mxu0
        %584 = vmatprep.mubr.bf16.mxu0 0
        %585 = vmatmul.mubr.bf16.gmra.mrb[0].mxu0 %v500
        %v586 = vpop.f32.mrb[0].mxu0
        %v587 = vadd.f32 0.0, %v586
        %v588 = vpop.f32.mrb[0].mxu0
        %v589 = vpop.f32.mrb[0].mxu0
        %v590 = vadd.f32 0.0, %v589
        %v591 = vpop.f32.mrb[0].mxu0
        %592 = vmatprep.mubr.bf16.mxu0 0
        %593 = vmatmul.mubr.bf16.gmra.mrb[0].mxu0 %v503
        %v594 = vpop.f32.mrb[0].mxu0
        %v595 = vadd.f32 0.0, %v594
        %v596 = vpop.f32.mrb[0].mxu0
        %v597 = vpop.f32.mrb[0].mxu0
        %v598 = vadd.f32 0.0, %v597
        %v599 = vpop.f32.mrb[0].mxu0
        %600 = vmatprep.mubr.bf16.mxu0 0
        %601 = vmatmul.mubr.bf16.gmra.mrb[0].mxu0 %v506
        %v602 = vpop.f32.mrb[0].mxu0
        %v603 = vadd.f32 0.0, %v602
        %v604 = vpop.f32.mrb[0].mxu0
        %v605 = vpop.f32.mrb[0].mxu0
        %v606 = vadd.f32 0.0, %v605
        %v607 = vpop.f32.mrb[0].mxu0
        %608 = vmatprep.mubr.bf16.mxu0 0
        %609 = vmatmul.mubr.bf16.gmra.mrb[0].mxu0 %v509
        %v610 = vpop.f32.mrb[0].mxu0
        %v611 = vadd.f32 0.0, %v610
        %v612 = vpop.f32.mrb[0].mxu0
        %v613 = vpop.f32.mrb[0].mxu0
        %v614 = vadd.f32 0.0, %v613
        %v615 = vpop.f32.mrb[0].mxu0
        %616 = vmatprep.mubr.bf16.mxu0 0
        %617 = vmatmul.mubr.bf16.gmra.mrb[0].mxu0 %v512
        %v618 = vpop.f32.mrb[0].mxu0
        %v619 = vadd.f32 0.0, %v618
        %v620 = vpop.f32.mrb[0].mxu0
        %v621 = vpop.f32.mrb[0].mxu0
        %v622 = vadd.f32 0.0, %v621
        %v623 = vpop.f32.mrb[0].mxu0
        %624 = vmatprep.mubr.bf16.mxu0 0
        %625 = vmatmul.mubr.bf16.gmra.mrb[0].mxu0 %v515
        %v626 = vpop.f32.mrb[0].mxu0
        %v627 = vadd.f32 0.0, %v626
        %v628 = vpop.f32.mrb[0].mxu0
        %v629 = vpop.f32.mrb[0].mxu0
        %v630 = vadd.f32 0.0, %v629
        %v631 = vpop.f32.mrb[0].mxu0
        %632 = vmatprep.mubr.bf16.mxu0 0
        %633 = vmatmul.mubr.bf16.gmra.mrb[0].mxu0 %v518
        %v634 = vpop.f32.mrb[0].mxu0
        %v635 = vadd.f32 0.0, %v634
        %v636 = vpop.f32.mrb[0].mxu0
        %v637 = vpop.f32.mrb[0].mxu0
        %v638 = vadd.f32 0.0, %v637
        %v639 = vpop.f32.mrb[0].mxu0
        %640 = vmatprep.mubr.bf16.mxu0 0
        %641 = vmatmul.mubr.bf16.gmra.mrb[0].mxu0 %v521
        %v642 = vpop.f32.mrb[0].mxu0
        %v643 = vadd.f32 0.0, %v642
        %v644 = vpop.f32.mrb[0].mxu0
        %v645 = vpop.f32.mrb[0].mxu0
        %v646 = vadd.f32 0.0, %v645
        %v647 = vpop.f32.mrb[0].mxu0
        %648 = vmatprep.mubr.bf16.mxu0 0
        %649 = vmatmul.mubr.bf16.gmra.mrb[0].mxu0 %v524
        %v650 = vpop.f32.mrb[0].mxu0
        %v651 = vadd.f32 0.0, %v650
        %v652 = vpop.f32.mrb[0].mxu0
        %v653 = vpop.f32.mrb[0].mxu0
        %v654 = vadd.f32 0.0, %v653
        %v655 = vpop.f32.mrb[0].mxu0
        %656 = vmatprep.mubr.bf16.mxu0 0
        %657 = vmatmul.mubr.bf16.gmra.mrb[0].mxu0 %v527
        %v658 = vpop.f32.mrb[0].mxu0
        %v659 = vadd.f32 0.0, %v658
        %v660 = vpop.f32.mrb[0].mxu0
        %v661 = vpop.f32.mrb[0].mxu0
        %v662 = vadd.f32 0.0, %v661
        %v663 = vpop.f32.mrb[0].mxu0
        %664 = vmatprep.mubr.bf16.mxu0 0
        %665 = vmatmul.mubr.bf16.gmra.mrb[0].mxu0 %v530
        %v666 = vpop.f32.mrb[0].mxu0
        %v667 = vadd.f32 0.0, %v666
        %v668 = vpop.f32.mrb[0].mxu0
        %v669 = vpop.f32.mrb[0].mxu0
        %v670 = vadd.f32 0.0, %v669
        %v671 = vpop.f32.mrb[0].mxu0
        %672 = vmatprep.mubr.bf16.mxu0 0
        %673 = vmatmul.mubr.bf16.gmra.mrb[0].mxu0 %v533
        %v674 = vpop.f32.mrb[0].mxu0
        %v675 = vadd.f32 0.0, %v674
        %v676 = vpop.f32.mrb[0].mxu0
        %v677 = vpop.f32.mrb[0].mxu0
        %v678 = vadd.f32 0.0, %v677
        %v679 = vpop.f32.mrb[0].mxu0
        %680 = vmatprep.mubr.bf16.mxu0 0
        %681 = vmatmul.mubr.bf16.gmra.mrb[0].mxu0 %v536
        %v682 = vpop.f32.mrb[0].mxu0
        %v683 = vadd.f32 0.0, %v682
        %v684 = vpop.f32.mrb[0].mxu0
        %v685 = vpop.f32.mrb[0].mxu0
        %v686 = vadd.f32 0.0, %v685
        %v687 = vpop.f32.mrb[0].mxu0
        %688 = vmatprep.mubr.bf16.mxu0 0
        %689 = vmatmul.mubr.bf16.gmra.mrb[0].mxu0 %v539
        %v690 = vpop.f32.mrb[0].mxu0
        %v691 = vadd.f32 0.0, %v690
        %v692 = vpop.f32.mrb[0].mxu0
        %v693 = vpop.f32.mrb[0].mxu0
        %v694 = vadd.f32 0.0, %v693
        %v695 = vpop.f32.mrb[0].mxu0
        %696 = vmatprep.mubr.bf16.mxu0 0
        %697 = vmatmul.mubr.bf16.gmra.mrb[0].mxu0 %v542
        %v698 = vpop.f32.mrb[0].mxu0
        %v699 = vadd.f32 0.0, %v698
        %v700 = vpop.f32.mrb[0].mxu0
        %v701 = vpop.f32.mrb[0].mxu0
        %v702 = vadd.f32 0.0, %v701
        %v703 = vpop.f32.mrb[0].mxu0
        %704 = vdwg.mxu0
        %v737 = vunpack.c.l.b16 %v311
        %v738 = vunpack.c.l.b16 %v312
        %v739 = vunpack.c.l.b16 %v313
        %v740 = vunpack.c.l.b16 %v314
        %v741 = vunpack.c.l.b16 %v315
        %v742 = vunpack.c.l.b16 %v316
        %v743 = vunpack.c.l.b16 %v317
        %v744 = vunpack.c.l.b16 %v318
        %v745 = vunpack.c.l.b16 %v319
        %v746 = vunpack.c.l.b16 %v320
        %v747 = vunpack.c.l.b16 %v321
        %v748 = vunpack.c.l.b16 %v322
        %v749 = vunpack.c.l.b16 %v323
        %v750 = vunpack.c.l.b16 %v324
        %v751 = vunpack.c.l.b16 %v325
        %v752 = vunpack.c.l.b16 %v326
        %v753 = vunpack.c.l.b16 %v327
        %v754 = vunpack.c.l.b16 %v328
        %v755 = vunpack.c.l.b16 %v329
        %v756 = vunpack.c.l.b16 %v330
        %v757 = vunpack.c.l.b16 %v331
        %v758 = vunpack.c.l.b16 %v332
        %v759 = vunpack.c.l.b16 %v333
        %v760 = vunpack.c.l.b16 %v334
        %v761 = vunpack.c.l.b16 %v335
        %v762 = vunpack.c.l.b16 %v336
        %v763 = vunpack.c.l.b16 %v337
        %v764 = vunpack.c.l.b16 %v338
        %v765 = vunpack.c.l.b16 %v339
        %v766 = vunpack.c.l.b16 %v340
        %v767 = vunpack.c.l.b16 %v341
        %v768 = vunpack.c.l.b16 %v342
        %v769 = vpack.c.b16 %v738, %v737
        %v770 = vpack.c.b16 %v740, %v739
        %v771 = vpack.c.b16 %v742, %v741
        %v772 = vpack.c.b16 %v744, %v743
        %v773 = vpack.c.b16 %v746, %v745
        %v774 = vpack.c.b16 %v748, %v747
        %v775 = vpack.c.b16 %v750, %v749
        %v776 = vpack.c.b16 %v752, %v751
        %v777 = vpack.c.b16 %v754, %v753
        %v778 = vpack.c.b16 %v756, %v755
        %v779 = vpack.c.b16 %v758, %v757
        %v780 = vpack.c.b16 %v760, %v759
        %v781 = vpack.c.b16 %v762, %v761
        %v782 = vpack.c.b16 %v764, %v763
        %v783 = vpack.c.b16 %v766, %v765
        %v784 = vpack.c.b16 %v768, %v767
        %v793 = vunpack.c.l.b16 %v343
        %v794 = vunpack.c.l.b16 %v344
        %v795 = vunpack.c.l.b16 %v345
        %v796 = vunpack.c.l.b16 %v346
        %v797 = vunpack.c.l.b16 %v347
        %v798 = vunpack.c.l.b16 %v348
        %v799 = vunpack.c.l.b16 %v349
        %v800 = vunpack.c.l.b16 %v350
        %v801 = vpack.c.b16 %v794, %v793
        %v802 = vpack.c.b16 %v796, %v795
        %v803 = vpack.c.b16 %v798, %v797
        %v804 = vpack.c.b16 %v800, %v799
        %v810 = vsel %vm495, %v769, 0
        %v813 = vsel %vm495, %v770, 0
        %v816 = vsel %vm495, %v771, 0
        %v819 = vsel %vm495, %v772, 0
        %v822 = vsel %vm495, %v773, 0
        %v825 = vsel %vm495, %v774, 0
        %v828 = vsel %vm495, %v775, 0
        %v831 = vsel %vm495, %v776, 0
        %v834 = vsel %vm495, %v777, 0
        %v837 = vsel %vm495, %v778, 0
        %v840 = vsel %vm495, %v779, 0
        %v843 = vsel %vm495, %v780, 0
        %v846 = vsel %vm495, %v781, 0
        %v849 = vsel %vm495, %v782, 0
        %v852 = vsel %vm495, %v783, 0
        %v855 = vsel %vm495, %v784, 0
        %857 = vmatprep.subr.bf16.mxu0 0
        %858 = vmatpush1.bf16.msra.mxu0 %v801
        %859 = vmatprep.subr.bf16.mxu0 0
        %860 = vmatpush1.bf16.msra.mxu0 %v802
        %861 = vmatprep.subr.bf16.mxu0 0
        %862 = vmatpush1.bf16.msra.mxu0 %v803
        %863 = vmatprep.subr.bf16.mxu0 0
        %864 = vmatpush1.bf16.msra.mxu0 %v804
        %865 = vmatprep.subr.bf16.mxu0 0
        %866 = vmatpush1.bf16.msra.mxu0 0
        %867 = vmatprep.subr.bf16.mxu0 0
        %868 = vmatpush1.bf16.msra.mxu0 0
        %869 = vmatprep.subr.bf16.mxu0 0
        %870 = vmatpush1.bf16.msra.mxu0 0
        %871 = vmatprep.subr.bf16.mxu0 0
        %872 = vmatpush1.bf16.msra.mxu0 0
        %873 = vmatprep.subr.bf16.mxu0 0
        %874 = vmatpush1.bf16.msra.mxu0 0
        %875 = vmatprep.subr.bf16.mxu0 0
        %876 = vmatpush1.bf16.msra.mxu0 0
        %877 = vmatprep.subr.bf16.mxu0 0
        %878 = vmatpush1.bf16.msra.mxu0 0
        %879 = vmatprep.subr.bf16.mxu0 0
        %880 = vmatpush1.bf16.msra.mxu0 0
        %881 = vmatprep.subr.bf16.mxu0 0
        %882 = vmatpush1.bf16.msra.mxu0 0
        %883 = vmatprep.subr.bf16.mxu0 0
        %884 = vmatpush1.bf16.msra.mxu0 0
        %885 = vmatprep.subr.bf16.mxu0 0
        %886 = vmatpush1.bf16.msra.mxu0 0
        %887 = vmatprep.subr.bf16.mxu0 0
        %888 = vmatpush1.bf16.msra.mxu0 0
        %889 = vmatprep.mubr.bf16.mxu0 0
        %890 = vmatmul.mubr.bf16.gmra.mrb[0].mxu0 %v810
        %v891 = vpop.f32.mrb[0].mxu0
        %v892 = vadd.f32 %v579, %v891
        %v893 = vpop.f32.mrb[0].mxu0
        %v894 = vpop.f32.mrb[0].mxu0
        %v895 = vadd.f32 %v582, %v894
        %v896 = vpop.f32.mrb[0].mxu0
        %897 = vmatprep.mubr.bf16.mxu0 0
        %898 = vmatmul.mubr.bf16.gmra.mrb[0].mxu0 %v813
        %v899 = vpop.f32.mrb[0].mxu0
        %v900 = vadd.f32 %v587, %v899
        %v901 = vpop.f32.mrb[0].mxu0
        %v902 = vpop.f32.mrb[0].mxu0
        %v903 = vadd.f32 %v590, %v902
        %v904 = vpop.f32.mrb[0].mxu0
        %905 = vmatprep.mubr.bf16.mxu0 0
        %906 = vmatmul.mubr.bf16.gmra.mrb[0].mxu0 %v816
        %v907 = vpop.f32.mrb[0].mxu0
        %v908 = vadd.f32 %v595, %v907
        %v909 = vpop.f32.mrb[0].mxu0
        %v910 = vpop.f32.mrb[0].mxu0
        %v911 = vadd.f32 %v598, %v910
        %v912 = vpop.f32.mrb[0].mxu0
        %913 = vmatprep.mubr.bf16.mxu0 0
        %914 = vmatmul.mubr.bf16.gmra.mrb[0].mxu0 %v819
        %v915 = vpop.f32.mrb[0].mxu0
        %v916 = vadd.f32 %v603, %v915
        %v917 = vpop.f32.mrb[0].mxu0
        %v918 = vpop.f32.mrb[0].mxu0
        %v919 = vadd.f32 %v606, %v918
        %v920 = vpop.f32.mrb[0].mxu0
        %921 = vmatprep.mubr.bf16.mxu0 0
        %922 = vmatmul.mubr.bf16.gmra.mrb[0].mxu0 %v822
        %v923 = vpop.f32.mrb[0].mxu0
        %v924 = vadd.f32 %v611, %v923
        %v925 = vpop.f32.mrb[0].mxu0
        %v926 = vpop.f32.mrb[0].mxu0
        %v927 = vadd.f32 %v614, %v926
        %v928 = vpop.f32.mrb[0].mxu0
        %929 = vmatprep.mubr.bf16.mxu0 0
        %930 = vmatmul.mubr.bf16.gmra.mrb[0].mxu0 %v825
        %v931 = vpop.f32.mrb[0].mxu0
        %v932 = vadd.f32 %v619, %v931
        %v933 = vpop.f32.mrb[0].mxu0
        %v934 = vpop.f32.mrb[0].mxu0
        %v935 = vadd.f32 %v622, %v934
        %v936 = vpop.f32.mrb[0].mxu0
        %937 = vmatprep.mubr.bf16.mxu0 0
        %938 = vmatmul.mubr.bf16.gmra.mrb[0].mxu0 %v828
        %v939 = vpop.f32.mrb[0].mxu0
        %v940 = vadd.f32 %v627, %v939
        %v941 = vpop.f32.mrb[0].mxu0
        %v942 = vpop.f32.mrb[0].mxu0
        %v943 = vadd.f32 %v630, %v942
        %v944 = vpop.f32.mrb[0].mxu0
        %945 = vmatprep.mubr.bf16.mxu0 0
        %946 = vmatmul.mubr.bf16.gmra.mrb[0].mxu0 %v831
        %v947 = vpop.f32.mrb[0].mxu0
        %v948 = vadd.f32 %v635, %v947
        %v949 = vpop.f32.mrb[0].mxu0
        %v950 = vpop.f32.mrb[0].mxu0
        %v951 = vadd.f32 %v638, %v950
        %v952 = vpop.f32.mrb[0].mxu0
        %953 = vmatprep.mubr.bf16.mxu0 0
        %954 = vmatmul.mubr.bf16.gmra.mrb[0].mxu0 %v834
        %v955 = vpop.f32.mrb[0].mxu0
        %v956 = vadd.f32 %v643, %v955
        %v957 = vpop.f32.mrb[0].mxu0
        %v958 = vpop.f32.mrb[0].mxu0
        %v959 = vadd.f32 %v646, %v958
        %v960 = vpop.f32.mrb[0].mxu0
        %961 = vmatprep.mubr.bf16.mxu0 0
        %962 = vmatmul.mubr.bf16.gmra.mrb[0].mxu0 %v837
        %v963 = vpop.f32.mrb[0].mxu0
        %v964 = vadd.f32 %v651, %v963
        %v965 = vpop.f32.mrb[0].mxu0
        %v966 = vpop.f32.mrb[0].mxu0
        %v967 = vadd.f32 %v654, %v966
        %v968 = vpop.f32.mrb[0].mxu0
        %969 = vmatprep.mubr.bf16.mxu0 0
        %970 = vmatmul.mubr.bf16.gmra.mrb[0].mxu0 %v840
        %v971 = vpop.f32.mrb[0].mxu0
        %v972 = vadd.f32 %v659, %v971
        %v973 = vpop.f32.mrb[0].mxu0
        %v974 = vpop.f32.mrb[0].mxu0
        %v975 = vadd.f32 %v662, %v974
        %v976 = vpop.f32.mrb[0].mxu0
        %977 = vmatprep.mubr.bf16.mxu0 0
        %978 = vmatmul.mubr.bf16.gmra.mrb[0].mxu0 %v843
        %v979 = vpop.f32.mrb[0].mxu0
        %v980 = vadd.f32 %v667, %v979
        %v981 = vpop.f32.mrb[0].mxu0
        %v982 = vpop.f32.mrb[0].mxu0
        %v983 = vadd.f32 %v670, %v982
        %v984 = vpop.f32.mrb[0].mxu0
        %985 = vmatprep.mubr.bf16.mxu0 0
        %986 = vmatmul.mubr.bf16.gmra.mrb[0].mxu0 %v846
        %v987 = vpop.f32.mrb[0].mxu0
        %v988 = vadd.f32 %v675, %v987
        %v989 = vpop.f32.mrb[0].mxu0
        %v990 = vpop.f32.mrb[0].mxu0
        %v991 = vadd.f32 %v678, %v990
        %v992 = vpop.f32.mrb[0].mxu0
        %993 = vmatprep.mubr.bf16.mxu0 0
        %994 = vmatmul.mubr.bf16.gmra.mrb[0].mxu0 %v849
        %v995 = vpop.f32.mrb[0].mxu0
        %v996 = vadd.f32 %v683, %v995
        %v997 = vpop.f32.mrb[0].mxu0
        %v998 = vpop.f32.mrb[0].mxu0
        %v999 = vadd.f32 %v686, %v998
        %v1000 = vpop.f32.mrb[0].mxu0
        %1001 = vmatprep.mubr.bf16.mxu0 0
        %1002 = vmatmul.mubr.bf16.gmra.mrb[0].mxu0 %v852
        %v1003 = vpop.f32.mrb[0].mxu0
        %v1004 = vadd.f32 %v691, %v1003
        %v1005 = vpop.f32.mrb[0].mxu0
        %v1006 = vpop.f32.mrb[0].mxu0
        %v1007 = vadd.f32 %v694, %v1006
        %v1008 = vpop.f32.mrb[0].mxu0
        %1009 = vmatprep.mubr.bf16.mxu0 0
        %1010 = vmatmul.mubr.bf16.gmra.mrb[0].mxu0 %v855
        %v1011 = vpop.f32.mrb[0].mxu0
        %v1012 = vadd.f32 %v699, %v1011
        %v1013 = vpop.f32.mrb[0].mxu0
        %v1014 = vpop.f32.mrb[0].mxu0
        %v1015 = vadd.f32 %v702, %v1014
        %v1016 = vpop.f32.mrb[0].mxu0
        %1017 = vdwg.mxu0
        %v1018 = vld [vmem:[%s308] sm:$0x1]
        %v1020 = vlaneseq
        %v1021 = vshrl.u32 %v1020, 7
        %v1022 = vsub.s32 0, %v1021
        %v1023 = vrot.slane %v1018, %v1022
        %v1025 = vadd.f32 %v892, %v1023
        %v1026 = vadd.f32 %v895, %v1023
        %v1027 = vadd.f32 %v900, %v1023
        %v1028 = vadd.f32 %v903, %v1023
        %v1029 = vadd.f32 %v908, %v1023
        %v1030 = vadd.f32 %v911, %v1023
        %v1031 = vadd.f32 %v916, %v1023
        %v1032 = vadd.f32 %v919, %v1023
        %v1033 = vadd.f32 %v924, %v1023
        %v1034 = vadd.f32 %v927, %v1023
        %v1035 = vadd.f32 %v932, %v1023
        %v1036 = vadd.f32 %v935, %v1023
        %v1037 = vadd.f32 %v940, %v1023
        %v1038 = vadd.f32 %v943, %v1023
        %v1039 = vadd.f32 %v948, %v1023
        %v1040 = vadd.f32 %v951, %v1023
        %v1041 = vadd.f32 %v956, %v1023
        %v1042 = vadd.f32 %v959, %v1023
        %v1043 = vadd.f32 %v964, %v1023
        %v1044 = vadd.f32 %v967, %v1023
        %v1045 = vadd.f32 %v972, %v1023
        %v1046 = vadd.f32 %v975, %v1023
        %v1047 = vadd.f32 %v980, %v1023
        %v1048 = vadd.f32 %v983, %v1023
        %v1049 = vadd.f32 %v988, %v1023
        %v1050 = vadd.f32 %v991, %v1023
        %v1051 = vadd.f32 %v996, %v1023
        %v1052 = vadd.f32 %v999, %v1023
        %v1053 = vadd.f32 %v1004, %v1023
        %v1054 = vadd.f32 %v1007, %v1023
        %v1055 = vadd.f32 %v1012, %v1023
        %v1056 = vadd.f32 %v1015, %v1023
        %v1057 = vmax.f32 %v1025, 0.0
        %v1058 = vmax.f32 %v1026, 0.0
        %v1059 = vmax.f32 %v1027, 0.0
        %v1060 = vmax.f32 %v1028, 0.0
        %v1061 = vmax.f32 %v1029, 0.0
        %v1062 = vmax.f32 %v1030, 0.0
        %v1063 = vmax.f32 %v1031, 0.0
        %v1064 = vmax.f32 %v1032, 0.0
        %v1065 = vmax.f32 %v1033, 0.0
        %v1066 = vmax.f32 %v1034, 0.0
        %v1067 = vmax.f32 %v1035, 0.0
        %v1068 = vmax.f32 %v1036, 0.0
        %v1069 = vmax.f32 %v1037, 0.0
        %v1070 = vmax.f32 %v1038, 0.0
        %v1071 = vmax.f32 %v1039, 0.0
        %v1072 = vmax.f32 %v1040, 0.0
        %v1073 = vmax.f32 %v1041, 0.0
        %v1074 = vmax.f32 %v1042, 0.0
        %v1075 = vmax.f32 %v1043, 0.0
        %v1076 = vmax.f32 %v1044, 0.0
        %v1077 = vmax.f32 %v1045, 0.0
        %v1078 = vmax.f32 %v1046, 0.0
        %v1079 = vmax.f32 %v1047, 0.0
        %v1080 = vmax.f32 %v1048, 0.0
        %v1081 = vmax.f32 %v1049, 0.0
        %v1082 = vmax.f32 %v1050, 0.0
        %v1083 = vmax.f32 %v1051, 0.0
        %v1084 = vmax.f32 %v1052, 0.0
        %v1085 = vmax.f32 %v1053, 0.0
        %v1086 = vmax.f32 %v1054, 0.0
        %v1087 = vmax.f32 %v1055, 0.0
        %v1088 = vmax.f32 %v1056, 0.0
        %1089 = vst [vmem:[%s285] sm:$0xff] %v1057
        %1090 = vst [vmem:[%s285 + $0x8] sm:$0xff] %v1058
        %1091 = vst [vmem:[%s285 + $0x10] sm:$0xff] %v1059
        %1092 = vst [vmem:[%s285 + $0x18] sm:$0xff] %v1060
        %1093 = vst [vmem:[%s285 + $0x20] sm:$0xff] %v1061
        %1094 = vst [vmem:[%s285 + $0x28] sm:$0xff] %v1062
        %1095 = vst [vmem:[%s285 + $0x30] sm:$0xff] %v1063
        %1096 = vst [vmem:[%s285 + $0x38] sm:$0xff] %v1064
        %1097 = vst [vmem:[%s285 + $0x40] sm:$0xff] %v1065
        %1098 = vst [vmem:[%s285 + $0x48] sm:$0xff] %v1066
        %1099 = vst [vmem:[%s285 + $0x50] sm:$0xff] %v1067
        %1100 = vst [vmem:[%s285 + $0x58] sm:$0xff] %v1068
        %1101 = vst [vmem:[%s285 + $0x60] sm:$0xff] %v1069
        %1102 = vst [vmem:[%s285 + $0x68] sm:$0xff] %v1070
        %1103 = vst [vmem:[%s285 + $0x70] sm:$0xff] %v1071
        %1104 = vst [vmem:[%s285 + $0x78] sm:$0xff] %v1072
        %1105 = vst [vmem:[%s285 + $0x80] sm:$0xff] %v1073
        %1106 = vst [vmem:[%s285 + $0x88] sm:$0xff] %v1074
        %1107 = vst [vmem:[%s285 + $0x90] sm:$0xff] %v1075
        %1108 = vst [vmem:[%s285 + $0x98] sm:$0xff] %v1076
        %1109 = vst [vmem:[%s285 + $0xa0] sm:$0xff] %v1077
        %1110 = vst [vmem:[%s285 + $0xa8] sm:$0xff] %v1078
        %1111 = vst [vmem:[%s285 + $0xb0] sm:$0xff] %v1079
        %1112 = vst [vmem:[%s285 + $0xb8] sm:$0xff] %v1080
        %1113 = vst [vmem:[%s285 + $0xc0] sm:$0xff] %v1081
        %1114 = vst [vmem:[%s285 + $0xc8] sm:$0xff] %v1082
        %1115 = vst [vmem:[%s285 + $0xd0] sm:$0xff] %v1083
        %1116 = vst [vmem:[%s285 + $0xd8] sm:$0xff] %v1084
        %1117 = vst [vmem:[%s285 + $0xe0] sm:$0xff] %v1085
        %1118 = vst [vmem:[%s285 + $0xe8] sm:$0xff] %v1086
        %1119 = vst [vmem:[%s285 + $0xf0] sm:$0xff] %v1087
        %1120 = vst [vmem:[%s285 + $0xf8] sm:$0xff] %v1088
        %s1121 = sand.u32 %s171, 1
        %s1122 = scalar_lea.sflag [#allocation3], %s1121
        %s1123 = sand.u32 %s171, 1
        %s1124 = smul.addr %s1123, 256
        %s1125 = scalar_lea.vmem [#allocation2], %s1124
        // Predicated region
        $region41: #{tpu_custom_call.1} parent=39 // pred_check
          %p1126 = pneg %p181
        $region42: #{tpu_custom_call.1} parent=39 // pred_check_branch
          %1128 = sbr.rel (%p1126) target = $region44
        $region43: #{tpu_custom_call.1} parent=39 // pred_region
          %s1129 = smul.u32 32, %s23
          %s1131 = ssub.s32 4096, 4096
          %1132 = vsyncadd %s1122, %s1131
          %s1133 = sadd.s32 %s24, %s1129
          %s1134 = smul.addr %s1133, 128
          %s1135 = scalar_lea.hbm %s5, %s1134
          %s1136 = sshll.u32 %s1125, 4
          %s1137 = int_to_ptr.vmem [resolvable:$true] %s1136
          %1142 = dma.vmem_to_hbm [thread:$0]  %s1137, 4096, %s1135, %s1122, 128, 128, 8
        $region44: #{tpu_custom_call.1} parent=39 // pred_fallthru
          _
      $region40: #{tpu_custom_call.1} parent=5 // pred_fallthru
        _
      %p1143 = scmp.le.s32.totalorder 2, %s14
      // Predicated region
      $region45: #{tpu_custom_call.1} parent=5 // pred_check
        %p1144 = pneg %p1143
      $region46: #{tpu_custom_call.1} parent=5 // pred_check_branch
        %1146 = sbr.rel (%p1144) target = $region48
      $region47: #{tpu_custom_call.1} parent=5 // pred_region
        %s1147 = ssub.s32 %s14, 2
        // Predicated region
        $region49: #{tpu_custom_call.1} parent=47 // pred_check
          %p1148 = pneg %p187
        $region50: #{tpu_custom_call.1} parent=47 // pred_check_branch
          %1150 = sbr.rel (%p1148) target = $region52
        $region51: #{tpu_custom_call.1} parent=47 // pred_region
          %s1151 = sand.u32 %s172, 1
          %s1152 = scalar_lea.sflag [#allocation3], %s1151
          %s1153 = sand.u32 %s172, 1
          %s1154 = smul.addr %s1153, 256
          %s1155 = scalar_lea.vmem [#allocation2], %s1154
          %1156 = dma.done %s1152, 4096
        $region52: #{tpu_custom_call.1} parent=47 // pred_fallthru
          _
      $region48: #{tpu_custom_call.1} parent=5 // pred_fallthru
        _
    $region6: #{tpu_custom_call.1} parent=1 // loop_footer
      %s18 = sadd.s32 1, %s14
    $region7: #{tpu_custom_call.1} parent=1 // loop_footer_branch
      %13 = sbr.rel target = $region3
    $region8: #{tpu_custom_call.1} parent=1 // loop_exit
      _
    %1157 = vsyncpa [#allocation3], 1
    %s1158 = scalar_lea.sflag [#allocation3], 1
    %1159 = vsyncpa %s1158, 1

</llo_original>
